<compile_context>
chip_gen: v7x
topology: tpu7x:2x2x1
jax: 0.10.0
libtpu: 0.0.40
codegen_flags: <defaults>
</compile_context>

<pallas_src>
import numpy as np
import jax
import jax.numpy as jnp
from jax.experimental import pallas as pl
from jax.experimental.pallas import tpu as pltpu

VMEM_SPEC = pl.BlockSpec(memory_space=pltpu.MemorySpace.VMEM)


# ----------------------------- fused Pallas kernel -------------------------- #

def _make_decoder_kernel(L, S, B, H, E, O):
    """Builds the fused decoder-step kernel for static (L, S, B, H, E, O)."""
    SB = S * B
    NEG = -1e30          # plain Python float -> inlined literal (no captured const)
    f32 = jnp.float32

    def kernel(*refs):
        (ids_ref, emb_ref, keys_ref, h_ref,
         sel_ref, selT_ref, gsel_ref,
         wattT_ref, wattb_ref, uattT_ref, uattb_ref, vcol_ref, vb_ref,
         fcwT_ref, fcb_ref) = refs[:15]
        n_gru = 4 * L + 1                      # layer0 has 5 tensors, others 4
        gru_refs = refs[15:15 + n_gru]
        out_ref, state_ref, attnw_ref = refs[15 + n_gru:]

        # ---- embedding lookup inside the kernel via one-hot matmul gather ----
        ids = ids_ref[...]                                             # (B,1) int32
        onehot = (jax.lax.broadcasted_iota(jnp.int32, (B, O), 1) == ids).astype(f32)
        embd = jnp.dot(onehot, emb_ref[...], preferred_element_type=f32)   # (B,E)
        x_e = jnp.maximum(embd, 0.0)                                    # F.relu(embedding)

        # ---- attention, batched over all S*B key rows ----
        # keys_ref is (S*B, H) with row r = (s, b), s = r // B, b = r % B.
        # sel  (S*B, B): sel[r, b]  = 1 iff r % B == b
        # selT (B, S*B): selT[b, r] = 1 iff r % B == b
        # gsel (S*B, S): gsel[r, s] = 1 iff r // B == s
        sel = sel_ref[...]
        q = h_ref[L - 1]                                                # (B,H) query
        wq = jnp.dot(q, wattT_ref[...], preferred_element_type=f32) + wattb_ref[...]
        wq_rep = jnp.dot(sel, wq, preferred_element_type=f32)          # (SB,H): wq[r % B]
        uk = (jnp.dot(keys_ref[...], uattT_ref[...], preferred_element_type=f32)
              + uattb_ref[...])                                         # (SB,H)  one MXU push
        calc = jnp.tanh(uk + wq_rep)
        sc = (jnp.dot(calc, vcol_ref[...], preferred_element_type=f32)
              + vb_ref[...])                                            # (SB,1) scores

        # softmax over the seq axis (per batch column), fully vectorized
        masked = jnp.where(sel > 0.0, sc, NEG)                          # (SB,B)
        m = jnp.max(masked, axis=0, keepdims=True)                      # (1,B) per-b max
        m_rep = jnp.sum(sel * m, axis=1, keepdims=True)                 # (SB,1)
        e = jnp.exp(sc - m_rep)                                         # (SB,1)
        denom = jnp.sum(sel * e, axis=0, keepdims=True)                 # (1,B)
        denom_rep = jnp.sum(sel * denom, axis=1, keepdims=True)         # (SB,1)
        w_col = e / denom_rep                                           # (SB,1) softmax wts

        selT = selT_ref[...]                                            # (B,SB)
        ctx = jnp.dot(selT, w_col * keys_ref[...],
                      preferred_element_type=f32)                       # (B,H) context
        attnw_ref[...] = jnp.dot(selT, w_col * gsel_ref[...],
                                 preferred_element_type=f32)            # (B,S)

        # ---- GRU stack, gate-fused matmuls (lane blocks ordered r | z | n) ----
        def gru_update(gi, gh, h_prev):
            r = jax.nn.sigmoid(gi[:, 0:H] + gh[:, 0:H])
            z = jax.nn.sigmoid(gi[:, H:2 * H] + gh[:, H:2 * H])
            n = jnp.tanh(gi[:, 2 * H:3 * H] + r * gh[:, 2 * H:3 * H])
            return (1.0 - z) * n + z * h_prev

        wie, wic, whh0, bih0, bhh0 = gru_refs[0:5]
        h_prev0 = h_ref[0]
        gi0 = (jnp.dot(x_e, wie[...], preferred_element_type=f32)
               + jnp.dot(ctx, wic[...], preferred_element_type=f32)
               + bih0[...])                                             # (B,3H)
        gh0 = jnp.dot(h_prev0, whh0[...], preferred_element_type=f32) + bhh0[...]
        x = gru_update(gi0, gh0, h_prev0)
        state_ref[0] = x

        for l in range(1, L):
            wih, whh, bih, bhh = gru_refs[5 + 4 * (l - 1): 5 + 4 * l]
            h_prev = h_ref[l]
            gi = jnp.dot(x, wih[...], preferred_element_type=f32) + bih[...]
            gh = jnp.dot(h_prev, whh[...], preferred_element_type=f32) + bhh[...]
            x = gru_update(gi, gh, h_prev)
            state_ref[l] = x

        # ---- dropout (eval identity) + fc + log_softmax ----
        logits = jnp.dot(x, fcwT_ref[...], preferred_element_type=f32) + fcb_ref[...]
        mx = jnp.max(logits, axis=-1, keepdims=True)
        sh = logits - mx
        lse = jnp.log(jnp.sum(jnp.exp(sh), axis=-1, keepdims=True))
        out_ref[...] = sh - lse                                         # (B,O)

    return kernel


# --------------------- one-time parameter preprocessing --------------------- #

def preprocess_params(params):
    """Hoists all weight transposes / gate reshapes out of the per-step path."""
    E = params['embedding'].shape[1]
    prep = {
        'embedding': params['embedding'],
        'watt_wT': params['watt_w'].T, 'watt_b': params['watt_b'][None, :],
        'uatt_wT': params['uatt_w'].T, 'uatt_b': params['uatt_b'][None, :],
        'vatt_col': params['vatt_w'].T,                       # (H,1)
        'vatt_b': params['vatt_b'].reshape(1, 1),
        'fc_wT': params['fc_w'].T, 'fc_b': params['fc_b'][None, :],
        'gru': [],
    }
    for l, g in enumerate(params['gru']):
        wihT = g['w_ih'].T          # (in, 3H), gate lanes ordered r | z | n
        whhT = g['w_hh'].T          # (H, 3H)
        bih = g['b_ih'][None, :]    # (1, 3H)
        bhh = g['b_hh'][None, :]
        if l == 0:
            prep['gru'].append({'wie': wihT[:E], 'wic': wihT[E:],
                                'whh': whhT, 'bih': bih, 'bhh': bhh})
        else:
            prep['gru'].append({'wih': wihT, 'whh': whhT, 'bih': bih, 'bhh': bhh})
    return jax.tree_util.tree_map(lambda a: jnp.asarray(a, jnp.float32), prep)


# --------------------------------- wrapper ----------------------------------- #

def decoder_forward(prep, current_input, prev_state, keys):
    """One decoder step (GRU cellType, eval-mode dropout) — single fused kernel."""
    L, B, H = prev_state.shape
    S = keys.shape[0]
    E = prep['embedding'].shape[1]
    O = prep['embedding'].shape[0]
    SB = S * B

    # tiny constant 0/1 selection matrices (baked as constants under jit)
    rows = np.arange(SB)
    sel = np.zeros((SB, B), np.float32);  sel[rows, rows % B] = 1.0
    gsel = np.zeros((SB, S), np.float32); gsel[rows, rows // B] = 1.0
    selT = np.ascontiguousarray(sel.T)

    keys_flat = keys.reshape(SB, H)                 # free row-major reshape
    ids = current_input.astype(jnp.int32)           # (B,1)

    inputs = [ids, prep['embedding'], keys_flat, prev_state,
              jnp.asarray(sel), jnp.asarray(selT), jnp.asarray(gsel),
              prep['watt_wT'], prep['watt_b'], prep['uatt_wT'], prep['uatt_b'],
              prep['vatt_col'], prep['vatt_b'], prep['fc_wT'], prep['fc_b']]
    g0 = prep['gru'][0]
    inputs += [g0['wie'], g0['wic'], g0['whh'], g0['bih'], g0['bhh']]
    for l in range(1, L):
        gl = prep['gru'][l]
        inputs += [gl['wih'], gl['whh'], gl['bih'], gl['bhh']]

    kernel = _make_decoder_kernel(L, S, B, H, E, O)
    out_logp, new_state, attn_w = pl.pallas_call(
        kernel,
        out_shape=(jax.ShapeDtypeStruct((B, O), jnp.float32),
                   jax.ShapeDtypeStruct((L, B, H), jnp.float32),
                   jax.ShapeDtypeStruct((B, S), jnp.float32)),
        in_specs=[VMEM_SPEC] * len(inputs),
        out_specs=(VMEM_SPEC, VMEM_SPEC, VMEM_SPEC),
    )(*inputs)

    output = out_logp[:, None, :]                   # (B,1,O) log-probs
    attn_weights = attn_w[:, None, :]               # (B,1,S)
    return output, new_state, attn_weights


# --------------------------- pure-JAX reference ----------------------------- #

def decoder_ref(params, current_input, prev_state, keys):
    L, B, H = prev_state.shape
    q = prev_state[-1]
    wq = q @ params['watt_w'].T + params['watt_b']
    uk = jnp.einsum('sbh,oh->sbo', keys, params['uatt_w']) + params['uatt_b']
    calc = jnp.tanh(wq[None] + uk)
    scores = jnp.einsum('sbh,oh->sbo', calc, params['vatt_w'])[:, :, 0] + params['vatt_b'][0]
    w = jax.nn.softmax(scores, axis=0)                   # softmax over seq (dim=0)
    attn_weights = jnp.transpose(w)[:, None, :]
    context = jnp.einsum('sb,sbh->bh', w, keys)
    embd = params['embedding'][current_input[:, 0]]
    inp = jnp.concatenate([jax.nn.relu(embd), context], axis=-1)
    hs = []
    for l in range(L):
        p = params['gru'][l]
        gi = inp @ p['w_ih'].T + p['b_ih']
        gh = prev_state[l] @ p['w_hh'].T + p['b_hh']
        i_r, i_z, i_n = jnp.split(gi, 3, axis=-1)
        h_r, h_z, h_n = jnp.split(gh, 3, axis=-1)
        r = jax.nn.sigmoid(i_r + h_r)
        z = jax.nn.sigmoid(i_z + h_z)
        n = jnp.tanh(i_n + r * h_n)
        h_new = (1.0 - z) * n + z * prev_state[l]
        hs.append(h_new)
        inp = h_new
    new_state = jnp.stack(hs, 0)
    logits = inp @ params['fc_w'].T + params['fc_b']
    out = jax.nn.log_softmax(logits, axis=-1)[:, None, :]
    return out, new_state, attn_weights


# ------------------------------ param init ---------------------------------- #

def init_params(key, out_dim, emb, hidden, layers):
    ks = iter(jax.random.split(key, 9 + 4 * layers))

    def u(shape, scale):
        return jax.random.uniform(next(ks), shape, jnp.float32, -scale, scale)

    s = hidden ** -0.5
    p = {
        'embedding': u((out_dim, emb), 0.5),
        'watt_w': u((hidden, hidden), s), 'watt_b': u((hidden,), s),
        'uatt_w': u((hidden, hidden), s), 'uatt_b': u((hidden,), s),
        'vatt_w': u((1, hidden), s),      'vatt_b': u((1,), s),
        'fc_w':  u((out_dim, hidden), s), 'fc_b':  u((out_dim,), s),
        'gru': [],
    }
    for l in range(layers):
        in_dim = emb + hidden if l == 0 else hidden
        p['gru'].append({
            'w_ih': u((3 * hidden, in_dim), s),
            'w_hh': u((3 * hidden, hidden), s),
            'b_ih': u((3 * hidden,), s),
            'b_hh': u((3 * hidden,), s),
        })
    return p


if __name__ == "__main__":
    OUT_DIM, EMB, HIDDEN, LAYERS, B, S = 16, 16, 32, 2, 2, 8

    key = jax.random.PRNGKey(0)
    kp, ki, kh, kk = jax.random.split(key, 4)
    params = init_params(kp, OUT_DIM, EMB, HIDDEN, LAYERS)

    current_input = jax.random.randint(ki, (B, 1), 0, OUT_DIM, dtype=jnp.int32)
    prev_state = 0.1 * jax.random.normal(kh, (LAYERS, B, HIDDEN), jnp.float32)
    encoder_final_layers = 0.1 * jax.random.normal(kk, (S, B, HIDDEN), jnp.float32)

    prep = preprocess_params(params)                 # one-time weight layout hoist
    step = jax.jit(decoder_forward)

    out, new_state, attn_w = step(prep, current_input, prev_state, encoder_final_layers)
    jax.block_until_ready((out, new_state, attn_w))

    ref_out, ref_state, ref_w = decoder_ref(
        params, current_input, prev_state, encoder_final_layers)
    assert out.shape == (B, 1, OUT_DIM)
    assert new_state.shape == (LAYERS, B, HIDDEN)
    assert attn_w.shape == (B, 1, S)
    assert jnp.allclose(out, ref_out, atol=1e-4, rtol=1e-4)
    assert jnp.allclose(new_state, ref_state, atol=1e-4, rtol=1e-4)
    assert jnp.allclose(attn_w, ref_w, atol=1e-4, rtol=1e-4)

    print("KERNEL_OK")
</pallas_src>

<mosaic_0001>
module attributes {stable_mosaic.version = 11 : i64} {
  func.func @kernel(%arg0: memref<2x1xi32, #tpu.memory_space<vmem>>, %arg1: memref<16x16xf32, #tpu.memory_space<vmem>>, %arg2: memref<16x32xf32, #tpu.memory_space<vmem>>, %arg3: memref<2x2x32xf32, #tpu.memory_space<vmem>>, %arg4: memref<16x2xf32, #tpu.memory_space<vmem>>, %arg5: memref<2x16xf32, #tpu.memory_space<vmem>>, %arg6: memref<16x8xf32, #tpu.memory_space<vmem>>, %arg7: memref<32x32xf32, #tpu.memory_space<vmem>>, %arg8: memref<1x32xf32, #tpu.memory_space<vmem>>, %arg9: memref<32x32xf32, #tpu.memory_space<vmem>>, %arg10: memref<1x32xf32, #tpu.memory_space<vmem>>, %arg11: memref<32x1xf32, #tpu.memory_space<vmem>>, %arg12: memref<1x1xf32, #tpu.memory_space<vmem>>, %arg13: memref<32x16xf32, #tpu.memory_space<vmem>>, %arg14: memref<1x16xf32, #tpu.memory_space<vmem>>, %arg15: memref<16x96xf32, #tpu.memory_space<vmem>>, %arg16: memref<32x96xf32, #tpu.memory_space<vmem>>, %arg17: memref<32x96xf32, #tpu.memory_space<vmem>>, %arg18: memref<1x96xf32, #tpu.memory_space<vmem>>, %arg19: memref<1x96xf32, #tpu.memory_space<vmem>>, %arg20: memref<32x96xf32, #tpu.memory_space<vmem>>, %arg21: memref<32x96xf32, #tpu.memory_space<vmem>>, %arg22: memref<1x96xf32, #tpu.memory_space<vmem>>, %arg23: memref<1x96xf32, #tpu.memory_space<vmem>>, %arg24: memref<2x16xf32, #tpu.memory_space<vmem>>, %arg25: memref<2x2x32xf32, #tpu.memory_space<vmem>>, %arg26: memref<2x8xf32, #tpu.memory_space<vmem>>) attributes {dimension_semantics = [], scalar_prefetch = 0 : i64, scratch_operands = 0 : i64, tpu.core_type = #tpu.core_type<tc>} {
    %c0 = arith.constant 0 : index
    %c0_0 = arith.constant 0 : index
    %0 = vector.load %arg0[%c0, %c0_0] : memref<2x1xi32, #tpu.memory_space<vmem>>, vector<2x1xi32>
    %1 = tpu.iota {dimensions = array<i32: 1>} : vector<2x16xi32>
    %2 = vector.broadcast %0 : vector<2x1xi32> to vector<2x16xi32>
    %3 = arith.cmpi eq, %1, %2 : vector<2x16xi32>
    %4 = arith.extui %3 : vector<2x16xi1> to vector<2x16xi32>
    %5 = arith.sitofp %4 : vector<2x16xi32> to vector<2x16xf32>
    %c0_1 = arith.constant 0 : index
    %c0_2 = arith.constant 0 : index
    %6 = vector.load %arg1[%c0_1, %c0_2] : memref<16x16xf32, #tpu.memory_space<vmem>>, vector<16x16xf32>
    %cst = arith.constant dense<0.000000e+00> : vector<2x16xf32>
    %7 = tpu.matmul %5, %6, %cst {dimension_numbers = #tpu.dot_dimension_numbers<[1], [0], [0], [1], [0, 0, 1, 1], [], []>} : vector<2x16xf32>, vector<16x16xf32>, vector<2x16xf32> -> vector<2x16xf32>
    %cst_3 = arith.constant 0.000000e+00 : f32
    %8 = vector.broadcast %cst_3 : f32 to vector<2x16xf32>
    %9 = arith.maximumf %7, %8 : vector<2x16xf32>
    %c0_4 = arith.constant 0 : index
    %c0_5 = arith.constant 0 : index
    %10 = vector.load %arg4[%c0_4, %c0_5] : memref<16x2xf32, #tpu.memory_space<vmem>>, vector<16x2xf32>
    %c1 = arith.constant 1 : index
    %c0_6 = arith.constant 0 : index
    %c0_7 = arith.constant 0 : index
    %11 = vector.load %arg3[%c1, %c0_6, %c0_7] : memref<2x2x32xf32, #tpu.memory_space<vmem>>, vector<1x2x32xf32>
    %12 = vector.shape_cast %11 : vector<1x2x32xf32> to vector<2x32xf32>
    %c0_8 = arith.constant 0 : index
    %c0_9 = arith.constant 0 : index
    %13 = vector.load %arg7[%c0_8, %c0_9] : memref<32x32xf32, #tpu.memory_space<vmem>>, vector<32x32xf32>
    %cst_10 = arith.constant dense<0.000000e+00> : vector<2x32xf32>
    %14 = tpu.matmul %12, %13, %cst_10 {dimension_numbers = #tpu.dot_dimension_numbers<[1], [0], [0], [1], [0, 0, 1, 1], [], []>} : vector<2x32xf32>, vector<32x32xf32>, vector<2x32xf32> -> vector<2x32xf32>
    %c0_11 = arith.constant 0 : index
    %c0_12 = arith.constant 0 : index
    %15 = vector.load %arg8[%c0_11, %c0_12] : memref<1x32xf32, #tpu.memory_space<vmem>>, vector<1x32xf32>
    %16 = vector.broadcast %15 : vector<1x32xf32> to vector<2x32xf32>
    %17 = arith.addf %14, %16 : vector<2x32xf32>
    %cst_13 = arith.constant dense<0.000000e+00> : vector<16x32xf32>
    %18 = tpu.matmul %10, %17, %cst_13 {dimension_numbers = #tpu.dot_dimension_numbers<[1], [0], [0], [1], [0, 0, 1, 1], [], []>} : vector<16x2xf32>, vector<2x32xf32>, vector<16x32xf32> -> vector<16x32xf32>
    %c0_14 = arith.constant 0 : index
    %c0_15 = arith.constant 0 : index
    %19 = vector.load %arg2[%c0_14, %c0_15] : memref<16x32xf32, #tpu.memory_space<vmem>>, vector<16x32xf32>
    %c0_16 = arith.constant 0 : index
    %c0_17 = arith.constant 0 : index
    %20 = vector.load %arg9[%c0_16, %c0_17] : memref<32x32xf32, #tpu.memory_space<vmem>>, vector<32x32xf32>
    %cst_18 = arith.constant dense<0.000000e+00> : vector<16x32xf32>
    %21 = tpu.matmul %19, %20, %cst_18 {dimension_numbers = #tpu.dot_dimension_numbers<[1], [0], [0], [1], [0, 0, 1, 1], [], []>} : vector<16x32xf32>, vector<32x32xf32>, vector<16x32xf32> -> vector<16x32xf32>
    %c0_19 = arith.constant 0 : index
    %c0_20 = arith.constant 0 : index
    %22 = vector.load %arg10[%c0_19, %c0_20] : memref<1x32xf32, #tpu.memory_space<vmem>>, vector<1x32xf32>
    %23 = vector.broadcast %22 : vector<1x32xf32> to vector<16x32xf32>
    %24 = arith.addf %21, %23 : vector<16x32xf32>
    %25 = arith.addf %24, %18 : vector<16x32xf32>
    %26 = math.tanh %25 : vector<16x32xf32>
    %c0_21 = arith.constant 0 : index
    %c0_22 = arith.constant 0 : index
    %27 = vector.load %arg11[%c0_21, %c0_22] : memref<32x1xf32, #tpu.memory_space<vmem>>, vector<32x1xf32>
    %cst_23 = arith.constant dense<0.000000e+00> : vector<16x1xf32>
    %28 = tpu.matmul %26, %27, %cst_23 {dimension_numbers = #tpu.dot_dimension_numbers<[1], [0], [0], [1], [0, 0, 1, 1], [], []>} : vector<16x32xf32>, vector<32x1xf32>, vector<16x1xf32> -> vector<16x1xf32>
    %c0_24 = arith.constant 0 : index
    %c0_25 = arith.constant 0 : index
    %29 = vector.load %arg12[%c0_24, %c0_25] : memref<1x1xf32, #tpu.memory_space<vmem>>, vector<1x1xf32>
    %30 = vector.broadcast %29 : vector<1x1xf32> to vector<16x1xf32>
    %31 = arith.addf %28, %30 : vector<16x1xf32>
    %cst_26 = arith.constant 0.000000e+00 : f32
    %32 = vector.broadcast %cst_26 : f32 to vector<16x2xf32>
    %33 = arith.cmpf ogt, %10, %32 : vector<16x2xf32>
    %cst_27 = arith.constant -1.000000e+30 : f32
    %34 = vector.shape_cast %31 : vector<16x1xf32> to vector<16x1xf32>
    %35 = vector.broadcast %34 : vector<16x1xf32> to vector<16x2xf32>
    %36 = vector.broadcast %cst_27 : f32 to vector<16x2xf32>
    %37 = arith.select %33, %35, %36 : vector<16x2xi1>, vector<16x2xf32>
    %cst_28 = arith.constant dense<0xFF800000> : vector<2xf32>
    %38 = vector.multi_reduction <maximumf>, %37, %cst_28 [0] : vector<16x2xf32> to vector<2xf32>
    %39 = vector.shape_cast %38 : vector<2xf32> to vector<1x2xf32>
    %40 = vector.broadcast %39 : vector<1x2xf32> to vector<16x2xf32>
    %41 = arith.mulf %10, %40 : vector<16x2xf32>
    %cst_29 = arith.constant dense<0.000000e+00> : vector<16xf32>
    %42 = vector.multi_reduction <add>, %41, %cst_29 [1] : vector<16x2xf32> to vector<16xf32>
    %43 = vector.shape_cast %42 : vector<16xf32> to vector<16x1xf32>
    %44 = arith.subf %31, %43 : vector<16x1xf32>
    %45 = math.exp %44 : vector<16x1xf32>
    %46 = vector.broadcast %45 : vector<16x1xf32> to vector<16x2xf32>
    %47 = arith.mulf %10, %46 : vector<16x2xf32>
    %cst_30 = arith.constant dense<0.000000e+00> : vector<2xf32>
    %48 = vector.multi_reduction <add>, %47, %cst_30 [0] : vector<16x2xf32> to vector<2xf32>
    %49 = vector.shape_cast %48 : vector<2xf32> to vector<1x2xf32>
    %50 = vector.broadcast %49 : vector<1x2xf32> to vector<16x2xf32>
    %51 = arith.mulf %10, %50 : vector<16x2xf32>
    %cst_31 = arith.constant dense<0.000000e+00> : vector<16xf32>
    %52 = vector.multi_reduction <add>, %51, %cst_31 [1] : vector<16x2xf32> to vector<16xf32>
    %53 = vector.shape_cast %52 : vector<16xf32> to vector<16x1xf32>
    %54 = arith.divf %45, %53 : vector<16x1xf32>
    %c0_32 = arith.constant 0 : index
    %c0_33 = arith.constant 0 : index
    %55 = vector.load %arg5[%c0_32, %c0_33] : memref<2x16xf32, #tpu.memory_space<vmem>>, vector<2x16xf32>
    %c0_34 = arith.constant 0 : index
    %c0_35 = arith.constant 0 : index
    %56 = vector.load %arg2[%c0_34, %c0_35] : memref<16x32xf32, #tpu.memory_space<vmem>>, vector<16x32xf32>
    %57 = vector.broadcast %54 : vector<16x1xf32> to vector<16x32xf32>
    %58 = arith.mulf %57, %56 : vector<16x32xf32>
    %cst_36 = arith.constant dense<0.000000e+00> : vector<2x32xf32>
    %59 = tpu.matmul %55, %58, %cst_36 {dimension_numbers = #tpu.dot_dimension_numbers<[1], [0], [0], [1], [0, 0, 1, 1], [], []>} : vector<2x16xf32>, vector<16x32xf32>, vector<2x32xf32> -> vector<2x32xf32>
    %c0_37 = arith.constant 0 : index
    %c0_38 = arith.constant 0 : index
    %60 = vector.load %arg6[%c0_37, %c0_38] : memref<16x8xf32, #tpu.memory_space<vmem>>, vector<16x8xf32>
    %61 = vector.broadcast %54 : vector<16x1xf32> to vector<16x8xf32>
    %62 = arith.mulf %61, %60 : vector<16x8xf32>
    %cst_39 = arith.constant dense<0.000000e+00> : vector<2x8xf32>
    %63 = tpu.matmul %55, %62, %cst_39 {dimension_numbers = #tpu.dot_dimension_numbers<[1], [0], [0], [1], [0, 0, 1, 1], [], []>} : vector<2x16xf32>, vector<16x8xf32>, vector<2x8xf32> -> vector<2x8xf32>
    %c0_40 = arith.constant 0 : index
    %c0_41 = arith.constant 0 : index
    %64 = vector.load %arg26[%c0_40, %c0_41] : memref<2x8xf32, #tpu.memory_space<vmem>>, vector<2x8xf32>
    tpu.vector_store %arg26[%c0_40, %c0_41], %63 {strides = array<i32>} : memref<2x8xf32, #tpu.memory_space<vmem>>, vector<2x8xf32>,
    %c0_42 = arith.constant 0 : index
    %c0_43 = arith.constant 0 : index
    %c0_44 = arith.constant 0 : index
    %65 = vector.load %arg3[%c0_42, %c0_43, %c0_44] : memref<2x2x32xf32, #tpu.memory_space<vmem>>, vector<1x2x32xf32>
    %66 = vector.shape_cast %65 : vector<1x2x32xf32> to vector<2x32xf32>
    %c0_45 = arith.constant 0 : index
    %c0_46 = arith.constant 0 : index
    %67 = vector.load %arg15[%c0_45, %c0_46] : memref<16x96xf32, #tpu.memory_space<vmem>>, vector<16x96xf32>
    %cst_47 = arith.constant dense<0.000000e+00> : vector<2x96xf32>
    %68 = tpu.matmul %9, %67, %cst_47 {dimension_numbers = #tpu.dot_dimension_numbers<[1], [0], [0], [1], [0, 0, 1, 1], [], []>} : vector<2x16xf32>, vector<16x96xf32>, vector<2x96xf32> -> vector<2x96xf32>
    %c0_48 = arith.constant 0 : index
    %c0_49 = arith.constant 0 : index
    %69 = vector.load %arg16[%c0_48, %c0_49] : memref<32x96xf32, #tpu.memory_space<vmem>>, vector<32x96xf32>
    %cst_50 = arith.constant dense<0.000000e+00> : vector<2x96xf32>
    %70 = tpu.matmul %59, %69, %cst_50 {dimension_numbers = #tpu.dot_dimension_numbers<[1], [0], [0], [1], [0, 0, 1, 1], [], []>} : vector<2x32xf32>, vector<32x96xf32>, vector<2x96xf32> -> vector<2x96xf32>
    %71 = arith.addf %68, %70 : vector<2x96xf32>
    %c0_51 = arith.constant 0 : index
    %c0_52 = arith.constant 0 : index
    %72 = vector.load %arg18[%c0_51, %c0_52] : memref<1x96xf32, #tpu.memory_space<vmem>>, vector<1x96xf32>
    %73 = vector.broadcast %72 : vector<1x96xf32> to vector<2x96xf32>
    %74 = arith.addf %71, %73 : vector<2x96xf32>
    %c0_53 = arith.constant 0 : index
    %c0_54 = arith.constant 0 : index
    %75 = vector.load %arg17[%c0_53, %c0_54] : memref<32x96xf32, #tpu.memory_space<vmem>>, vector<32x96xf32>
    %cst_55 = arith.constant dense<0.000000e+00> : vector<2x96xf32>
    %76 = tpu.matmul %66, %75, %cst_55 {dimension_numbers = #tpu.dot_dimension_numbers<[1], [0], [0], [1], [0, 0, 1, 1], [], []>} : vector<2x32xf32>, vector<32x96xf32>, vector<2x96xf32> -> vector<2x96xf32>
    %c0_56 = arith.constant 0 : index
    %c0_57 = arith.constant 0 : index
    %77 = vector.load %arg19[%c0_56, %c0_57] : memref<1x96xf32, #tpu.memory_space<vmem>>, vector<1x96xf32>
    %78 = vector.broadcast %77 : vector<1x96xf32> to vector<2x96xf32>
    %79 = arith.addf %76, %78 : vector<2x96xf32>
    %80 = vector.extract_strided_slice %74 {offsets = [0, 0], sizes = [2, 32], strides = [1, 1]} : vector<2x96xf32> to vector<2x32xf32>
    %81 = vector.extract_strided_slice %79 {offsets = [0, 0], sizes = [2, 32], strides = [1, 1]} : vector<2x96xf32> to vector<2x32xf32>
    %82 = arith.addf %80, %81 : vector<2x32xf32>
    %83 = arith.negf %82 : vector<2x32xf32>
    %84 = math.exp %83 : vector<2x32xf32>
    %cst_58 = arith.constant 1.000000e+00 : f32
    %85 = vector.broadcast %cst_58 : f32 to vector<2x32xf32>
    %86 = arith.addf %85, %84 : vector<2x32xf32>
    %87 = arith.divf %85, %86 : vector<2x32xf32>
    %88 = vector.extract_strided_slice %74 {offsets = [0, 32], sizes = [2, 32], strides = [1, 1]} : vector<2x96xf32> to vector<2x32xf32>
    %89 = vector.extract_strided_slice %79 {offsets = [0, 32], sizes = [2, 32], strides = [1, 1]} : vector<2x96xf32> to vector<2x32xf32>
    %90 = arith.addf %88, %89 : vector<2x32xf32>
    %91 = arith.negf %90 : vector<2x32xf32>
    %92 = math.exp %91 : vector<2x32xf32>
    %cst_59 = arith.constant 1.000000e+00 : f32
    %93 = vector.broadcast %cst_59 : f32 to vector<2x32xf32>
    %94 = arith.addf %93, %92 : vector<2x32xf32>
    %95 = arith.divf %93, %94 : vector<2x32xf32>
    %96 = vector.extract_strided_slice %74 {offsets = [0, 64], sizes = [2, 32], strides = [1, 1]} : vector<2x96xf32> to vector<2x32xf32>
    %97 = vector.extract_strided_slice %79 {offsets = [0, 64], sizes = [2, 32], strides = [1, 1]} : vector<2x96xf32> to vector<2x32xf32>
    %98 = arith.mulf %87, %97 : vector<2x32xf32>
    %99 = arith.addf %96, %98 : vector<2x32xf32>
    %100 = math.tanh %99 : vector<2x32xf32>
    %cst_60 = arith.constant 1.000000e+00 : f32
    %101 = vector.broadcast %cst_60 : f32 to vector<2x32xf32>
    %102 = arith.subf %101, %95 : vector<2x32xf32>
    %103 = arith.mulf %102, %100 : vector<2x32xf32>
    %104 = arith.mulf %95, %66 : vector<2x32xf32>
    %105 = arith.addf %103, %104 : vector<2x32xf32>
    %c0_61 = arith.constant 0 : index
    %c0_62 = arith.constant 0 : index
    %c0_63 = arith.constant 0 : index
    %106 = vector.load %arg25[%c0_61, %c0_62, %c0_63] : memref<2x2x32xf32, #tpu.memory_space<vmem>>, vector<1x2x32xf32>
    %107 = vector.shape_cast %106 : vector<1x2x32xf32> to vector<2x32xf32>
    %108 = vector.shape_cast %105 : vector<2x32xf32> to vector<1x2x32xf32>
    tpu.vector_store %arg25[%c0_61, %c0_62, %c0_63], %108 {strides = array<i32>} : memref<2x2x32xf32, #tpu.memory_space<vmem>>, vector<1x2x32xf32>,
    %c1_64 = arith.constant 1 : index
    %c0_65 = arith.constant 0 : index
    %c0_66 = arith.constant 0 : index
    %109 = vector.load %arg3[%c1_64, %c0_65, %c0_66] : memref<2x2x32xf32, #tpu.memory_space<vmem>>, vector<1x2x32xf32>
    %110 = vector.shape_cast %109 : vector<1x2x32xf32> to vector<2x32xf32>
    %c0_67 = arith.constant 0 : index
    %c0_68 = arith.constant 0 : index
    %111 = vector.load %arg20[%c0_67, %c0_68] : memref<32x96xf32, #tpu.memory_space<vmem>>, vector<32x96xf32>
    %cst_69 = arith.constant dense<0.000000e+00> : vector<2x96xf32>
    %112 = tpu.matmul %105, %111, %cst_69 {dimension_numbers = #tpu.dot_dimension_numbers<[1], [0], [0], [1], [0, 0, 1, 1], [], []>} : vector<2x32xf32>, vector<32x96xf32>, vector<2x96xf32> -> vector<2x96xf32>
    %c0_70 = arith.constant 0 : index
    %c0_71 = arith.constant 0 : index
    %113 = vector.load %arg22[%c0_70, %c0_71] : memref<1x96xf32, #tpu.memory_space<vmem>>, vector<1x96xf32>
    %114 = vector.broadcast %113 : vector<1x96xf32> to vector<2x96xf32>
    %115 = arith.addf %112, %114 : vector<2x96xf32>
    %c0_72 = arith.constant 0 : index
    %c0_73 = arith.constant 0 : index
    %116 = vector.load %arg21[%c0_72, %c0_73] : memref<32x96xf32, #tpu.memory_space<vmem>>, vector<32x96xf32>
    %cst_74 = arith.constant dense<0.000000e+00> : vector<2x96xf32>
    %117 = tpu.matmul %110, %116, %cst_74 {dimension_numbers = #tpu.dot_dimension_numbers<[1], [0], [0], [1], [0, 0, 1, 1], [], []>} : vector<2x32xf32>, vector<32x96xf32>, vector<2x96xf32> -> vector<2x96xf32>
    %c0_75 = arith.constant 0 : index
    %c0_76 = arith.constant 0 : index
    %118 = vector.load %arg23[%c0_75, %c0_76] : memref<1x96xf32, #tpu.memory_space<vmem>>, vector<1x96xf32>
    %119 = vector.broadcast %118 : vector<1x96xf32> to vector<2x96xf32>
    %120 = arith.addf %117, %119 : vector<2x96xf32>
    %121 = vector.extract_strided_slice %115 {offsets = [0, 0], sizes = [2, 32], strides = [1, 1]} : vector<2x96xf32> to vector<2x32xf32>
    %122 = vector.extract_strided_slice %120 {offsets = [0, 0], sizes = [2, 32], strides = [1, 1]} : vector<2x96xf32> to vector<2x32xf32>
    %123 = arith.addf %121, %122 : vector<2x32xf32>
    %124 = arith.negf %123 : vector<2x32xf32>
    %125 = math.exp %124 : vector<2x32xf32>
    %cst_77 = arith.constant 1.000000e+00 : f32
    %126 = vector.broadcast %cst_77 : f32 to vector<2x32xf32>
    %127 = arith.addf %126, %125 : vector<2x32xf32>
    %128 = arith.divf %126, %127 : vector<2x32xf32>
    %129 = vector.extract_strided_slice %115 {offsets = [0, 32], sizes = [2, 32], strides = [1, 1]} : vector<2x96xf32> to vector<2x32xf32>
    %130 = vector.extract_strided_slice %120 {offsets = [0, 32], sizes = [2, 32], strides = [1, 1]} : vector<2x96xf32> to vector<2x32xf32>
    %131 = arith.addf %129, %130 : vector<2x32xf32>
    %132 = arith.negf %131 : vector<2x32xf32>
    %133 = math.exp %132 : vector<2x32xf32>
    %cst_78 = arith.constant 1.000000e+00 : f32
    %134 = vector.broadcast %cst_78 : f32 to vector<2x32xf32>
    %135 = arith.addf %134, %133 : vector<2x32xf32>
    %136 = arith.divf %134, %135 : vector<2x32xf32>
    %137 = vector.extract_strided_slice %115 {offsets = [0, 64], sizes = [2, 32], strides = [1, 1]} : vector<2x96xf32> to vector<2x32xf32>
    %138 = vector.extract_strided_slice %120 {offsets = [0, 64], sizes = [2, 32], strides = [1, 1]} : vector<2x96xf32> to vector<2x32xf32>
    %139 = arith.mulf %128, %138 : vector<2x32xf32>
    %140 = arith.addf %137, %139 : vector<2x32xf32>
    %141 = math.tanh %140 : vector<2x32xf32>
    %cst_79 = arith.constant 1.000000e+00 : f32
    %142 = vector.broadcast %cst_79 : f32 to vector<2x32xf32>
    %143 = arith.subf %142, %136 : vector<2x32xf32>
    %144 = arith.mulf %143, %141 : vector<2x32xf32>
    %145 = arith.mulf %136, %110 : vector<2x32xf32>
    %146 = arith.addf %144, %145 : vector<2x32xf32>
    %c1_80 = arith.constant 1 : index
    %c0_81 = arith.constant 0 : index
    %c0_82 = arith.constant 0 : index
    %147 = vector.load %arg25[%c1_80, %c0_81, %c0_82] : memref<2x2x32xf32, #tpu.memory_space<vmem>>, vector<1x2x32xf32>
    %148 = vector.shape_cast %147 : vector<1x2x32xf32> to vector<2x32xf32>
    %149 = vector.shape_cast %146 : vector<2x32xf32> to vector<1x2x32xf32>
    tpu.vector_store %arg25[%c1_80, %c0_81, %c0_82], %149 {strides = array<i32>} : memref<2x2x32xf32, #tpu.memory_space<vmem>>, vector<1x2x32xf32>,
    %c0_83 = arith.constant 0 : index
    %c0_84 = arith.constant 0 : index
    %150 = vector.load %arg13[%c0_83, %c0_84] : memref<32x16xf32, #tpu.memory_space<vmem>>, vector<32x16xf32>
    %cst_85 = arith.constant dense<0.000000e+00> : vector<2x16xf32>
    %151 = tpu.matmul %146, %150, %cst_85 {dimension_numbers = #tpu.dot_dimension_numbers<[1], [0], [0], [1], [0, 0, 1, 1], [], []>} : vector<2x32xf32>, vector<32x16xf32>, vector<2x16xf32> -> vector<2x16xf32>
    %c0_86 = arith.constant 0 : index
    %c0_87 = arith.constant 0 : index
    %152 = vector.load %arg14[%c0_86, %c0_87] : memref<1x16xf32, #tpu.memory_space<vmem>>, vector<1x16xf32>
    %153 = vector.broadcast %152 : vector<1x16xf32> to vector<2x16xf32>
    %154 = arith.addf %151, %153 : vector<2x16xf32>
    %cst_88 = arith.constant dense<0xFF800000> : vector<2xf32>
    %155 = vector.multi_reduction <maximumf>, %154, %cst_88 [1] : vector<2x16xf32> to vector<2xf32>
    %156 = vector.shape_cast %155 : vector<2xf32> to vector<2x1xf32>
    %157 = vector.broadcast %156 : vector<2x1xf32> to vector<2x16xf32>
    %158 = arith.subf %154, %157 : vector<2x16xf32>
    %159 = math.exp %158 : vector<2x16xf32>
    %cst_89 = arith.constant dense<0.000000e+00> : vector<2xf32>
    %160 = vector.multi_reduction <add>, %159, %cst_89 [1] : vector<2x16xf32> to vector<2xf32>
    %161 = vector.shape_cast %160 : vector<2xf32> to vector<2x1xf32>
    %162 = math.log %161 : vector<2x1xf32>
    %163 = vector.broadcast %162 : vector<2x1xf32> to vector<2x16xf32>
    %164 = arith.subf %158, %163 : vector<2x16xf32>
    %c0_90 = arith.constant 0 : index
    %c0_91 = arith.constant 0 : index
    %165 = vector.load %arg24[%c0_90, %c0_91] : memref<2x16xf32, #tpu.memory_space<vmem>>, vector<2x16xf32>
    tpu.vector_store %arg24[%c0_90, %c0_91], %164 {strides = array<i32>} : memref<2x16xf32, #tpu.memory_space<vmem>>, vector<2x16xf32>,
    return
  }
}

</mosaic_0001>

<llo_original>
// kernel: decoder_forward.1
$region0: #{decoder_forward.1}
  #allocation0 [shape = 'u32[]', space=smem, size = 0x4, offset = 0x4, fixed_abs, tag = 'smem constant byte address 0x4 - core index']
  #allocation1 [shape = 'u32[144,128]{1,0:T(1,128)}', space=vmem, size = 0x12000, scoped, tag = 'internal scratch']
  #allocation2 [shape = 'f32[1,1]{1,0:T(1,128)S(1)}', space=vmem, size = 0x200, scoped, tag = 'scoped memory for decoder_forward.1']
  %s0 = inlined_call_operand.vmem [shape: s32[2,1], index: 0, kind: input, shape index: {}]
  %s1 = inlined_call_operand.hbm [shape: f32[16,16], index: 1, kind: input, shape index: {}]
  %s2 = inlined_call_operand.vmem [shape: f32[16,32], index: 2, kind: input, shape index: {}]
  %s3 = inlined_call_operand.hbm [shape: f32[2,2,32], index: 3, kind: input, shape index: {}]
  %s4 = inlined_call_operand.hbm [shape: f32[16,2], index: 4, kind: input, shape index: {}]
  %s5 = inlined_call_operand.vmem [shape: f32[2,16], index: 5, kind: input, shape index: {}]
  %s6 = inlined_call_operand.vmem [shape: f32[16,8], index: 6, kind: input, shape index: {}]
  %s7 = inlined_call_operand.vmem [shape: f32[32,32], index: 7, kind: input, shape index: {}]
  %s8 = inlined_call_operand.hbm [shape: f32[1,32], index: 8, kind: input, shape index: {}]
  %s9 = inlined_call_operand.vmem [shape: f32[32,32], index: 9, kind: input, shape index: {}]
  %s10 = inlined_call_operand.hbm [shape: f32[1,32], index: 10, kind: input, shape index: {}]
  %s11 = inlined_call_operand.vmem [shape: f32[32,1], index: 11, kind: input, shape index: {}]
  %s12 = inlined_call_operand.<no memory space> [shape: f32[1,1], index: 12, kind: input, shape index: {}]
  %s13 = inlined_call_operand.vmem [shape: f32[32,16], index: 13, kind: input, shape index: {}]
  %s14 = inlined_call_operand.hbm [shape: f32[1,16], index: 14, kind: input, shape index: {}]
  %s15 = inlined_call_operand.hbm [shape: f32[16,96], index: 15, kind: input, shape index: {}]
  %s16 = inlined_call_operand.vmem [shape: f32[32,96], index: 16, kind: input, shape index: {}]
  %s17 = inlined_call_operand.hbm [shape: f32[32,96], index: 17, kind: input, shape index: {}]
  %s18 = inlined_call_operand.hbm [shape: f32[1,96], index: 18, kind: input, shape index: {}]
  %s19 = inlined_call_operand.hbm [shape: f32[1,96], index: 19, kind: input, shape index: {}]
  %s20 = inlined_call_operand.vmem [shape: f32[32,96], index: 20, kind: input, shape index: {}]
  %s21 = inlined_call_operand.hbm [shape: f32[32,96], index: 21, kind: input, shape index: {}]
  %s22 = inlined_call_operand.hbm [shape: f32[1,96], index: 22, kind: input, shape index: {}]
  %s23 = inlined_call_operand.hbm [shape: f32[1,96], index: 23, kind: input, shape index: {}]
  %s24 = inlined_call_operand.hbm [shape: f32[2,16], index: 24, kind: output, shape index: {0}]
  %s25 = inlined_call_operand.hbm [shape: f32[2,2,32], index: 25, kind: output, shape index: {1}]
  %s26 = inlined_call_operand.hbm [shape: f32[2,8], index: 26, kind: output, shape index: {2}]
  %27 = xla_tuple %s24, %s25, %s26
  %s28 = sld [smem:[#allocation0]]
  $region174: #{decoder_forward.1} parent=0
    _
  %s30 = ssub.s32 1, %s28
  %s31 = scalar_select 0, %s30, %s28
  %v32 = vstv %s12
  %33 = vst [vmem:[#allocation2] sm:$0x1] %v32
  $region1: #{decoder_forward.1} parent=0
    #allocation3 [shape = 'u8[8192]{0}', space=vmem, size = 0x2000, scoped, tag = 'input window, operand 1, single buffered']
    #allocation4 [shape = 's32[1]{0}', space=sflag, size = 0x4, scoped, tag = 'scoped memory for decoder_forward.1']
    #allocation5 [shape = 's32[1]{0}', space=sflag, size = 0x4, scoped, tag = 'scoped memory for decoder_forward.1']
    #allocation6 [shape = 'u8[2048]{0}', space=vmem, size = 0x800, scoped, tag = 'input window, operand 3, single buffered']
    #allocation7 [shape = 's32[1]{0}', space=sflag, size = 0x4, scoped, tag = 'scoped memory for decoder_forward.1']
    #allocation8 [shape = 'u8[8192]{0}', space=vmem, size = 0x2000, scoped, tag = 'input window, operand 4, single buffered']
    #allocation9 [shape = 'u8[512]{0}', space=vmem, size = 0x400, scoped, tag = 'input window, operand 8, single buffered']
    #allocation10 [shape = 's32[1]{0}', space=sflag, size = 0x4, scoped, tag = 'scoped memory for decoder_forward.1']
    #allocation11 [shape = 'u8[512]{0}', space=vmem, size = 0x400, scoped, tag = 'input window, operand 10, single buffered']
    #allocation12 [shape = 'u8[512]{0}', space=vmem, size = 0x400, scoped, tag = 'input window, operand 14, single buffered']
    #allocation13 [shape = 's32[1]{0}', space=sflag, size = 0x4, scoped, tag = 'scoped memory for decoder_forward.1']
    #allocation14 [shape = 'u8[8192]{0}', space=vmem, size = 0x2000, scoped, tag = 'input window, operand 15, single buffered']
    #allocation15 [shape = 'u8[16384]{0}', space=vmem, size = 0x4000, scoped, tag = 'input window, operand 17, single buffered']
    #allocation16 [shape = 's32[1]{0}', space=sflag, size = 0x4, scoped, tag = 'scoped memory for decoder_forward.1']
    #allocation17 [shape = 'u8[512]{0}', space=vmem, size = 0x400, scoped, tag = 'input window, operand 18, single buffered']
    #allocation18 [shape = 'u8[512]{0}', space=vmem, size = 0x400, scoped, tag = 'input window, operand 19, single buffered']
    #allocation19 [shape = 's32[1]{0}', space=sflag, size = 0x4, scoped, tag = 'scoped memory for decoder_forward.1']
    #allocation20 [shape = 'u8[16384]{0}', space=vmem, size = 0x4000, scoped, tag = 'input window, operand 21, single buffered']
    #allocation21 [shape = 'u8[512]{0}', space=vmem, size = 0x400, scoped, tag = 'input window, operand 22, single buffered']
    #allocation22 [shape = 's32[1]{0}', space=sflag, size = 0x4, scoped, tag = 'scoped memory for decoder_forward.1']
    #allocation23 [shape = 'u8[512]{0}', space=vmem, size = 0x400, scoped, tag = 'input window, operand 23, single buffered']
    #allocation24 [shape = 'u8[1024]{0}', space=vmem, size = 0x400, scoped, tag = 'output window, operand 0, single buffered']
    #allocation25 [shape = 'u8[2048]{0}', space=vmem, size = 0x800, scoped, tag = 'output window, operand 1, single buffered']
    #allocation26 [shape = 's32[1]{0}', space=sflag, size = 0x4, scoped, tag = 'scoped memory for decoder_forward.1']
    #allocation27 [shape = 'u8[1024]{0}', space=vmem, size = 0x400, scoped, tag = 'output window, operand 2, single buffered']
    %34 = vsyncpa [#allocation4], 0
    %35 = vsyncpa [#allocation7], 0
    %36 = vsyncpa [#allocation10], 0
    %37 = vsyncpa [#allocation13], 0
    %38 = vsyncpa [#allocation16], 0
    %39 = vsyncpa [#allocation19], 0
    %40 = vsyncpa [#allocation22], 0
    %41 = vsyncpa [#allocation5], 0
    %42 = vsyncpa [#allocation26], 0
    // Predicated region
    $region2: #{decoder_forward.1} parent=1 // pred_check
      _
    $region3: #{decoder_forward.1} parent=1 // pred_check_branch
      %44 = sbr.rel (0) target = $region5
    $region4: #{decoder_forward.1} parent=1 // pred_region
      _
    $region5: #{decoder_forward.1} parent=1 // pred_fallthru
      _
    // Predicated region
    $region6: #{decoder_forward.1} parent=1 // pred_check
      _
    $region7: #{decoder_forward.1} parent=1 // pred_check_branch
      %46 = sbr.rel (0) target = $region9
    $region8: #{decoder_forward.1} parent=1 // pred_region
      %s48 = ssub.s32 256, 256
      %49 = vsyncadd [#allocation4], %s48
      %s50 = sshll.u32 [#allocation3], 4
      %s51 = int_to_ptr.vmem [resolvable:$true] %s50
      %56 = dma.hbm_to_vmem [thread:$0]  %s1, 256, %s51, [#allocation4], 128, 128, 8
    $region9: #{decoder_forward.1} parent=1 // pred_fallthru
      _
    // Predicated region
    $region10: #{decoder_forward.1} parent=1 // pred_check
      _
    $region11: #{decoder_forward.1} parent=1 // pred_check_branch
      %58 = sbr.rel (0) target = $region13
    $region12: #{decoder_forward.1} parent=1 // pred_region
      _
    $region13: #{decoder_forward.1} parent=1 // pred_fallthru
      _
    // Predicated region
    $region14: #{decoder_forward.1} parent=1 // pred_check
      _
    $region15: #{decoder_forward.1} parent=1 // pred_check_branch
      %60 = sbr.rel (0) target = $region17
    $region16: #{decoder_forward.1} parent=1 // pred_region
      %s62 = ssub.s32 64, 64
      %63 = vsyncadd [#allocation7], %s62
      %s64 = sshll.u32 [#allocation6], 4
      %s65 = int_to_ptr.vmem [resolvable:$true] %s64
      %70 = dma.hbm_to_vmem [thread:$0]  %s3, 64, %s65, [#allocation7], 32, 32, 2
    $region17: #{decoder_forward.1} parent=1 // pred_fallthru
      _
    // Predicated region
    $region18: #{decoder_forward.1} parent=1 // pred_check
      _
    $region19: #{decoder_forward.1} parent=1 // pred_check_branch
      %72 = sbr.rel (0) target = $region21
    $region20: #{decoder_forward.1} parent=1 // pred_region
      %s74 = ssub.s32 256, 256
      %75 = vsyncadd [#allocation7], %s74
      %s76 = sshll.u32 [#allocation8], 4
      %s77 = int_to_ptr.vmem [resolvable:$true] %s76
      %82 = dma.hbm_to_vmem [thread:$0]  %s4, 256, %s77, [#allocation7], 128, 128, 8
    $region21: #{decoder_forward.1} parent=1 // pred_fallthru
      _
    // Predicated region
    $region22: #{decoder_forward.1} parent=1 // pred_check
      _
    $region23: #{decoder_forward.1} parent=1 // pred_check_branch
      %84 = sbr.rel (0) target = $region25
    $region24: #{decoder_forward.1} parent=1 // pred_region
      _
    $region25: #{decoder_forward.1} parent=1 // pred_fallthru
      _
    // Predicated region
    $region26: #{decoder_forward.1} parent=1 // pred_check
      _
    $region27: #{decoder_forward.1} parent=1 // pred_check_branch
      %86 = sbr.rel (0) target = $region29
    $region28: #{decoder_forward.1} parent=1 // pred_region
      _
    $region29: #{decoder_forward.1} parent=1 // pred_fallthru
      _
    // Predicated region
    $region30: #{decoder_forward.1} parent=1 // pred_check
      _
    $region31: #{decoder_forward.1} parent=1 // pred_check_branch
      %88 = sbr.rel (0) target = $region33
    $region32: #{decoder_forward.1} parent=1 // pred_region
      _
    $region33: #{decoder_forward.1} parent=1 // pred_fallthru
      _
    // Predicated region
    $region34: #{decoder_forward.1} parent=1 // pred_check
      _
    $region35: #{decoder_forward.1} parent=1 // pred_check_branch
      %90 = sbr.rel (0) target = $region37
    $region36: #{decoder_forward.1} parent=1 // pred_region
      %s92 = ssub.s32 16, 16
      %93 = vsyncadd [#allocation10], %s92
      %s95 = sshll.u32 [#allocation9], 4
      %s96 = int_to_ptr.vmem [resolvable:$true] %s95
      %98 = dma.hbm_to_vmem [thread:$0]  %s8, 16, %s96, [#allocation10]
    $region37: #{decoder_forward.1} parent=1 // pred_fallthru
      _
    // Predicated region
    $region38: #{decoder_forward.1} parent=1 // pred_check
      _
    $region39: #{decoder_forward.1} parent=1 // pred_check_branch
      %100 = sbr.rel (0) target = $region41
    $region40: #{decoder_forward.1} parent=1 // pred_region
      _
    $region41: #{decoder_forward.1} parent=1 // pred_fallthru
      _
    // Predicated region
    $region42: #{decoder_forward.1} parent=1 // pred_check
      _
    $region43: #{decoder_forward.1} parent=1 // pred_check_branch
      %102 = sbr.rel (0) target = $region45
    $region44: #{decoder_forward.1} parent=1 // pred_region
      %s104 = ssub.s32 16, 16
      %105 = vsyncadd [#allocation10], %s104
      %s107 = sshll.u32 [#allocation11], 4
      %s108 = int_to_ptr.vmem [resolvable:$true] %s107
      %110 = dma.hbm_to_vmem [thread:$0]  %s10, 16, %s108, [#allocation10]
    $region45: #{decoder_forward.1} parent=1 // pred_fallthru
      _
    // Predicated region
    $region46: #{decoder_forward.1} parent=1 // pred_check
      _
    $region47: #{decoder_forward.1} parent=1 // pred_check_branch
      %112 = sbr.rel (0) target = $region49
    $region48: #{decoder_forward.1} parent=1 // pred_region
      _
    $region49: #{decoder_forward.1} parent=1 // pred_fallthru
      _
    // Predicated region
    $region50: #{decoder_forward.1} parent=1 // pred_check
      _
    $region51: #{decoder_forward.1} parent=1 // pred_check_branch
      %114 = sbr.rel (0) target = $region53
    $region52: #{decoder_forward.1} parent=1 // pred_region
      _
    $region53: #{decoder_forward.1} parent=1 // pred_fallthru
      _
    // Predicated region
    $region54: #{decoder_forward.1} parent=1 // pred_check
      _
    $region55: #{decoder_forward.1} parent=1 // pred_check_branch
      %116 = sbr.rel (0) target = $region57
    $region56: #{decoder_forward.1} parent=1 // pred_region
      _
    $region57: #{decoder_forward.1} parent=1 // pred_fallthru
      _
    // Predicated region
    $region58: #{decoder_forward.1} parent=1 // pred_check
      _
    $region59: #{decoder_forward.1} parent=1 // pred_check_branch
      %118 = sbr.rel (0) target = $region61
    $region60: #{decoder_forward.1} parent=1 // pred_region
      %s120 = ssub.s32 16, 16
      %121 = vsyncadd [#allocation13], %s120
      %s123 = sshll.u32 [#allocation12], 4
      %s124 = int_to_ptr.vmem [resolvable:$true] %s123
      %126 = dma.hbm_to_vmem [thread:$0]  %s14, 16, %s124, [#allocation13]
    $region61: #{decoder_forward.1} parent=1 // pred_fallthru
      _
    // Predicated region
    $region62: #{decoder_forward.1} parent=1 // pred_check
      _
    $region63: #{decoder_forward.1} parent=1 // pred_check_branch
      %128 = sbr.rel (0) target = $region65
    $region64: #{decoder_forward.1} parent=1 // pred_region
      %s130 = ssub.s32 256, 256
      %131 = vsyncadd [#allocation13], %s130
      %s132 = sshll.u32 [#allocation14], 4
      %s133 = int_to_ptr.vmem [resolvable:$true] %s132
      %138 = dma.hbm_to_vmem [thread:$0]  %s15, 256, %s133, [#allocation13], 128, 128, 8
    $region65: #{decoder_forward.1} parent=1 // pred_fallthru
      _
    // Predicated region
    $region66: #{decoder_forward.1} parent=1 // pred_check
      _
    $region67: #{decoder_forward.1} parent=1 // pred_check_branch
      %140 = sbr.rel (0) target = $region69
    $region68: #{decoder_forward.1} parent=1 // pred_region
      _
    $region69: #{decoder_forward.1} parent=1 // pred_fallthru
      _
    // Predicated region
    $region70: #{decoder_forward.1} parent=1 // pred_check
      _
    $region71: #{decoder_forward.1} parent=1 // pred_check_branch
      %142 = sbr.rel (0) target = $region73
    $region72: #{decoder_forward.1} parent=1 // pred_region
      %s144 = ssub.s32 512, 512
      %145 = vsyncadd [#allocation16], %s144
      %s146 = sshll.u32 [#allocation15], 4
      %s147 = int_to_ptr.vmem [resolvable:$true] %s146
      %152 = dma.hbm_to_vmem [thread:$0]  %s17, 512, %s147, [#allocation16], 128, 128, 8
    $region73: #{decoder_forward.1} parent=1 // pred_fallthru
      _
    // Predicated region
    $region74: #{decoder_forward.1} parent=1 // pred_check
      _
    $region75: #{decoder_forward.1} parent=1 // pred_check_branch
      %154 = sbr.rel (0) target = $region77
    $region76: #{decoder_forward.1} parent=1 // pred_region
      %s156 = ssub.s32 16, 16
      %157 = vsyncadd [#allocation16], %s156
      %s159 = sshll.u32 [#allocation17], 4
      %s160 = int_to_ptr.vmem [resolvable:$true] %s159
      %162 = dma.hbm_to_vmem [thread:$0]  %s18, 16, %s160, [#allocation16]
    $region77: #{decoder_forward.1} parent=1 // pred_fallthru
      _
    // Predicated region
    $region78: #{decoder_forward.1} parent=1 // pred_check
      _
    $region79: #{decoder_forward.1} parent=1 // pred_check_branch
      %164 = sbr.rel (0) target = $region81
    $region80: #{decoder_forward.1} parent=1 // pred_region
      %s166 = ssub.s32 16, 16
      %167 = vsyncadd [#allocation19], %s166
      %s169 = sshll.u32 [#allocation18], 4
      %s170 = int_to_ptr.vmem [resolvable:$true] %s169
      %172 = dma.hbm_to_vmem [thread:$0]  %s19, 16, %s170, [#allocation19]
    $region81: #{decoder_forward.1} parent=1 // pred_fallthru
      _
    // Predicated region
    $region82: #{decoder_forward.1} parent=1 // pred_check
      _
    $region83: #{decoder_forward.1} parent=1 // pred_check_branch
      %174 = sbr.rel (0) target = $region85
    $region84: #{decoder_forward.1} parent=1 // pred_region
      _
    $region85: #{decoder_forward.1} parent=1 // pred_fallthru
      _
    // Predicated region
    $region86: #{decoder_forward.1} parent=1 // pred_check
      _
    $region87: #{decoder_forward.1} parent=1 // pred_check_branch
      %176 = sbr.rel (0) target = $region89
    $region88: #{decoder_forward.1} parent=1 // pred_region
      %s178 = ssub.s32 512, 512
      %179 = vsyncadd [#allocation19], %s178
      %s180 = sshll.u32 [#allocation20], 4
      %s181 = int_to_ptr.vmem [resolvable:$true] %s180
      %186 = dma.hbm_to_vmem [thread:$0]  %s21, 512, %s181, [#allocation19], 128, 128, 8
    $region89: #{decoder_forward.1} parent=1 // pred_fallthru
      _
    // Predicated region
    $region90: #{decoder_forward.1} parent=1 // pred_check
      _
    $region91: #{decoder_forward.1} parent=1 // pred_check_branch
      %188 = sbr.rel (0) target = $region93
    $region92: #{decoder_forward.1} parent=1 // pred_region
      %s190 = ssub.s32 16, 16
      %191 = vsyncadd [#allocation22], %s190
      %s193 = sshll.u32 [#allocation21], 4
      %s194 = int_to_ptr.vmem [resolvable:$true] %s193
      %196 = dma.hbm_to_vmem [thread:$0]  %s22, 16, %s194, [#allocation22]
    $region93: #{decoder_forward.1} parent=1 // pred_fallthru
      _
    // Predicated region
    $region94: #{decoder_forward.1} parent=1 // pred_check
      _
    $region95: #{decoder_forward.1} parent=1 // pred_check_branch
      %198 = sbr.rel (0) target = $region97
    $region96: #{decoder_forward.1} parent=1 // pred_region
      %s200 = ssub.s32 16, 16
      %201 = vsyncadd [#allocation22], %s200
      %s203 = sshll.u32 [#allocation23], 4
      %s204 = int_to_ptr.vmem [resolvable:$true] %s203
      %206 = dma.hbm_to_vmem [thread:$0]  %s23, 16, %s204, [#allocation22]
    $region97: #{decoder_forward.1} parent=1 // pred_fallthru
      _
    // Predicated region
    $region98: #{decoder_forward.1} parent=1 // pred_check
      _
    $region99: #{decoder_forward.1} parent=1 // pred_check_branch
      %208 = sbr.rel (0) target = $region101
    $region100: #{decoder_forward.1} parent=1 // pred_region
      %209 = dma.done [#allocation4], 256
    $region101: #{decoder_forward.1} parent=1 // pred_fallthru
      _
    // Predicated region
    $region102: #{decoder_forward.1} parent=1 // pred_check
      _
    $region103: #{decoder_forward.1} parent=1 // pred_check_branch
      %211 = sbr.rel (0) target = $region105
    $region104: #{decoder_forward.1} parent=1 // pred_region
      %212 = dma.done [#allocation7], 64
    $region105: #{decoder_forward.1} parent=1 // pred_fallthru
      _
    // Predicated region
    $region106: #{decoder_forward.1} parent=1 // pred_check
      _
    $region107: #{decoder_forward.1} parent=1 // pred_check_branch
      %214 = sbr.rel (0) target = $region109
    $region108: #{decoder_forward.1} parent=1 // pred_region
      %215 = dma.done [#allocation7], 256
    $region109: #{decoder_forward.1} parent=1 // pred_fallthru
      _
    // Predicated region
    $region110: #{decoder_forward.1} parent=1 // pred_check
      _
    $region111: #{decoder_forward.1} parent=1 // pred_check_branch
      %217 = sbr.rel (0) target = $region113
    $region112: #{decoder_forward.1} parent=1 // pred_region
      %218 = dma.done [#allocation10], 16
    $region113: #{decoder_forward.1} parent=1 // pred_fallthru
      _
    // Predicated region
    $region114: #{decoder_forward.1} parent=1 // pred_check
      _
    $region115: #{decoder_forward.1} parent=1 // pred_check_branch
      %220 = sbr.rel (0) target = $region117
    $region116: #{decoder_forward.1} parent=1 // pred_region
      %221 = dma.done [#allocation10], 16
    $region117: #{decoder_forward.1} parent=1 // pred_fallthru
      _
    // Predicated region
    $region118: #{decoder_forward.1} parent=1 // pred_check
      _
    $region119: #{decoder_forward.1} parent=1 // pred_check_branch
      %223 = sbr.rel (0) target = $region121
    $region120: #{decoder_forward.1} parent=1 // pred_region
      %224 = dma.done [#allocation13], 16
    $region121: #{decoder_forward.1} parent=1 // pred_fallthru
      _
    // Predicated region
    $region122: #{decoder_forward.1} parent=1 // pred_check
      _
    $region123: #{decoder_forward.1} parent=1 // pred_check_branch
      %226 = sbr.rel (0) target = $region125
    $region124: #{decoder_forward.1} parent=1 // pred_region
      %227 = dma.done [#allocation13], 256
    $region125: #{decoder_forward.1} parent=1 // pred_fallthru
      _
    // Predicated region
    $region126: #{decoder_forward.1} parent=1 // pred_check
      _
    $region127: #{decoder_forward.1} parent=1 // pred_check_branch
      %229 = sbr.rel (0) target = $region129
    $region128: #{decoder_forward.1} parent=1 // pred_region
      %230 = dma.done [#allocation16], 512
    $region129: #{decoder_forward.1} parent=1 // pred_fallthru
      _
    // Predicated region
    $region130: #{decoder_forward.1} parent=1 // pred_check
      _
    $region131: #{decoder_forward.1} parent=1 // pred_check_branch
      %232 = sbr.rel (0) target = $region133
    $region132: #{decoder_forward.1} parent=1 // pred_region
      %233 = dma.done [#allocation16], 16
    $region133: #{decoder_forward.1} parent=1 // pred_fallthru
      _
    // Predicated region
    $region134: #{decoder_forward.1} parent=1 // pred_check
      _
    $region135: #{decoder_forward.1} parent=1 // pred_check_branch
      %235 = sbr.rel (0) target = $region137
    $region136: #{decoder_forward.1} parent=1 // pred_region
      %236 = dma.done [#allocation19], 16
    $region137: #{decoder_forward.1} parent=1 // pred_fallthru
      _
    // Predicated region
    $region138: #{decoder_forward.1} parent=1 // pred_check
      _
    $region139: #{decoder_forward.1} parent=1 // pred_check_branch
      %238 = sbr.rel (0) target = $region141
    $region140: #{decoder_forward.1} parent=1 // pred_region
      %239 = dma.done [#allocation19], 512
    $region141: #{decoder_forward.1} parent=1 // pred_fallthru
      _
    // Predicated region
    $region142: #{decoder_forward.1} parent=1 // pred_check
      _
    $region143: #{decoder_forward.1} parent=1 // pred_check_branch
      %241 = sbr.rel (0) target = $region145
    $region144: #{decoder_forward.1} parent=1 // pred_region
      %242 = dma.done [#allocation22], 16
    $region145: #{decoder_forward.1} parent=1 // pred_fallthru
      _
    // Predicated region
    $region146: #{decoder_forward.1} parent=1 // pred_check
      _
    $region147: #{decoder_forward.1} parent=1 // pred_check_branch
      %244 = sbr.rel (0) target = $region149
    $region148: #{decoder_forward.1} parent=1 // pred_region
      %245 = dma.done [#allocation22], 16
    $region149: #{decoder_forward.1} parent=1 // pred_fallthru
      _
    %v246 = vld [vmem:[%s0] sm:$0x3]
    %v247 = vlaneseq
    %v248 = vand.u32 %v247, 127
    %249 = vset.pattern.permute.xlu0 0
    %250 = vperm.xlu0 %249, %v246
    %v251 = vpop.permute.xlu0 %250
    %vm252 = vcmp.eq.s32.totalorder %v248, %v251
    %v253 = vsel %vm252, 1, 0
    %v254 = vcvt.s32.f32 %v253
    %v255 = vld [vmem:[#allocation3] sm:$0xff]
    %v256 = vld [vmem:[#allocation3 + $0x8] sm:$0xff]
    %vm257 = vcmask 130048
    %v259 = vsel %vm257, %v254, 0
    %261 = vmatprep.subr.mxu0 0.0
    %262 = vmatpush1.msra.mxu0 %v255
    %263 = vmatprep.subr.mxu0 0.0
    %264 = vmatpush1.msra.mxu0 %v256
    %265 = vmatprep.subr.mxu0 0.0
    %266 = vmatpush1.msra.mxu0 0.0
    %267 = vmatprep.subr.mxu0 0.0
    %268 = vmatpush1.msra.mxu0 0.0
    %269 = vmatprep.subr.mxu0 0.0
    %270 = vmatpush1.msra.mxu0 0.0
    %271 = vmatprep.subr.mxu0 0.0
    %272 = vmatpush1.msra.mxu0 0.0
    %273 = vmatprep.subr.mxu0 0.0
    %274 = vmatpush1.msra.mxu0 0.0
    %275 = vmatprep.subr.mxu0 0.0
    %276 = vmatpush1.msra.mxu0 0.0
    %277 = vmatprep.subr.mxu0 0.0
    %278 = vmatpush1.msra.mxu0 0.0
    %279 = vmatprep.subr.mxu0 0.0
    %280 = vmatpush1.msra.mxu0 0.0
    %281 = vmatprep.subr.mxu0 0.0
    %282 = vmatpush1.msra.mxu0 0.0
    %283 = vmatprep.subr.mxu0 0.0
    %284 = vmatpush1.msra.mxu0 0.0
    %285 = vmatprep.subr.mxu0 0.0
    %286 = vmatpush1.msra.mxu0 0.0
    %287 = vmatprep.subr.mxu0 0.0
    %288 = vmatpush1.msra.mxu0 0.0
    %289 = vmatprep.subr.mxu0 0.0
    %290 = vmatpush1.msra.mxu0 0.0
    %291 = vmatprep.subr.mxu0 0.0
    %292 = vmatpush1.msra.mxu0 0.0
    %293 = vmatprep.subr.mxu0 0.0
    %294 = vmatpush1.msra.mxu0 0.0
    %295 = vmatprep.subr.mxu0 0.0
    %296 = vmatpush1.msra.mxu0 0.0
    %297 = vmatprep.subr.mxu0 0.0
    %298 = vmatpush1.msra.mxu0 0.0
    %299 = vmatprep.subr.mxu0 0.0
    %300 = vmatpush1.msra.mxu0 0.0
    %301 = vmatprep.subr.mxu0 0.0
    %302 = vmatpush1.msra.mxu0 0.0
    %303 = vmatprep.subr.mxu0 0.0
    %304 = vmatpush1.msra.mxu0 0.0
    %305 = vmatprep.subr.mxu0 0.0
    %306 = vmatpush1.msra.mxu0 0.0
    %307 = vmatprep.subr.mxu0 0.0
    %308 = vmatpush1.msra.mxu0 0.0
    %309 = vmatprep.subr.mxu0 0.0
    %310 = vmatpush1.msra.mxu0 0.0
    %311 = vmatprep.subr.mxu0 0.0
    %312 = vmatpush1.msra.mxu0 0.0
    %313 = vmatprep.subr.mxu0 0.0
    %314 = vmatpush1.msra.mxu0 0.0
    %315 = vmatprep.subr.mxu0 0.0
    %316 = vmatpush1.msra.mxu0 0.0
    %317 = vmatprep.subr.mxu0 0.0
    %318 = vmatpush1.msra.mxu0 0.0
    %319 = vmatprep.subr.mxu0 0.0
    %320 = vmatpush1.msra.mxu0 0.0
    %321 = vmatprep.subr.mxu0 0.0
    %322 = vmatpush1.msra.mxu0 0.0
    %323 = vmatprep.subr.mxu0 0.0
    %324 = vmatpush1.msra.mxu0 0.0
    %325 = vmatprep.mubr.f32.mxu0 0.0
    %326 = vmatmul.mubr.f32.gmra.mrb[0].mxu0 %v259
    %v327 = vpop.f32.mrb[0].mxu0
    %v328 = vadd.f32 0.0, %v327
    %v329 = vpop.f32.mrb[0].mxu0
    %330 = vdwg.mxu0
    %v331 = vmax.f32 %v328, 0.0
    %v332 = vld [vmem:[#allocation8] sm:$0xff]
    %v333 = vld [vmem:[#allocation8 + $0x8] sm:$0xff]
    %s334 = scalar_lea.vmem [#allocation6], 2
    %v335 = vld [vmem:[%s334] sm:$0x3]
    %v336 = vld [vmem:[%s7] sm:$0xff]
    %v337 = vld [vmem:[%s7 + $0x8] sm:$0xff]
    %v338 = vld [vmem:[%s7 + $0x10] sm:$0xff]
    %v339 = vld [vmem:[%s7 + $0x18] sm:$0xff]
    %v340 = vld [vmem:[#allocation9] sm:$0x1]
    %v342 = vlaneseq
    %v343 = vshrl.u32 %v342, 7
    %v344 = vsub.s32 0, %v343
    %v345 = vrot.slane %v340, %v344
    %vm347 = vcmask 261120
    %v349 = vsel %vm347, %v335, 0
    %351 = vmatprep.subr.mxu0 0.0
    %352 = vmatpush1.msra.mxu0 %v336
    %353 = vmatprep.subr.mxu0 0.0
    %354 = vmatpush1.msra.mxu0 %v337
    %355 = vmatprep.subr.mxu0 0.0
    %356 = vmatpush1.msra.mxu0 %v338
    %357 = vmatprep.subr.mxu0 0.0
    %358 = vmatpush1.msra.mxu0 %v339
    %359 = vmatprep.subr.mxu0 0.0
    %360 = vmatpush1.msra.mxu0 0.0
    %361 = vmatprep.subr.mxu0 0.0
    %362 = vmatpush1.msra.mxu0 0.0
    %363 = vmatprep.subr.mxu0 0.0
    %364 = vmatpush1.msra.mxu0 0.0
    %365 = vmatprep.subr.mxu0 0.0
    %366 = vmatpush1.msra.mxu0 0.0
    %367 = vmatprep.subr.mxu0 0.0
    %368 = vmatpush1.msra.mxu0 0.0
    %369 = vmatprep.subr.mxu0 0.0
    %370 = vmatpush1.msra.mxu0 0.0
    %371 = vmatprep.subr.mxu0 0.0
    %372 = vmatpush1.msra.mxu0 0.0
    %373 = vmatprep.subr.mxu0 0.0
    %374 = vmatpush1.msra.mxu0 0.0
    %375 = vmatprep.subr.mxu0 0.0
    %376 = vmatpush1.msra.mxu0 0.0
    %377 = vmatprep.subr.mxu0 0.0
    %378 = vmatpush1.msra.mxu0 0.0
    %379 = vmatprep.subr.mxu0 0.0
    %380 = vmatpush1.msra.mxu0 0.0
    %381 = vmatprep.subr.mxu0 0.0
    %382 = vmatpush1.msra.mxu0 0.0
    %383 = vmatprep.subr.mxu0 0.0
    %384 = vmatpush1.msra.mxu0 0.0
    %385 = vmatprep.subr.mxu0 0.0
    %386 = vmatpush1.msra.mxu0 0.0
    %387 = vmatprep.subr.mxu0 0.0
    %388 = vmatpush1.msra.mxu0 0.0
    %389 = vmatprep.subr.mxu0 0.0
    %390 = vmatpush1.msra.mxu0 0.0
    %391 = vmatprep.subr.mxu0 0.0
    %392 = vmatpush1.msra.mxu0 0.0
    %393 = vmatprep.subr.mxu0 0.0
    %394 = vmatpush1.msra.mxu0 0.0
    %395 = vmatprep.subr.mxu0 0.0
    %396 = vmatpush1.msra.mxu0 0.0
    %397 = vmatprep.subr.mxu0 0.0
    %398 = vmatpush1.msra.mxu0 0.0
    %399 = vmatprep.subr.mxu0 0.0
    %400 = vmatpush1.msra.mxu0 0.0
    %401 = vmatprep.subr.mxu0 0.0
    %402 = vmatpush1.msra.mxu0 0.0
    %403 = vmatprep.subr.mxu0 0.0
    %404 = vmatpush1.msra.mxu0 0.0
    %405 = vmatprep.subr.mxu0 0.0
    %406 = vmatpush1.msra.mxu0 0.0
    %407 = vmatprep.subr.mxu0 0.0
    %408 = vmatpush1.msra.mxu0 0.0
    %409 = vmatprep.subr.mxu0 0.0
    %410 = vmatpush1.msra.mxu0 0.0
    %411 = vmatprep.subr.mxu0 0.0
    %412 = vmatpush1.msra.mxu0 0.0
    %413 = vmatprep.subr.mxu0 0.0
    %414 = vmatpush1.msra.mxu0 0.0
    %415 = vmatprep.mubr.f32.mxu0 0.0
    %416 = vmatmul.mubr.f32.gmra.mrb[0].mxu0 %v349
    %v417 = vpop.f32.mrb[0].mxu0
    %v418 = vadd.f32 %v345, %v417
    %v419 = vpop.f32.mrb[0].mxu0
    %420 = vdwg.mxu0
    %vm421 = vcmask 15360
    %v423 = vsel %vm421, %v332, 0
    %v426 = vsel %vm421, %v333, 0
    %vm428 = vcmask 1041408
    %v430 = vsel %vm428, %v418, 0
    %432 = vmatprep.subr.mxu0 0.0
    %433 = vmatpush1.msra.mxu0 %v430
    %434 = vmatprep.subr.mxu0 0.0
    %435 = vmatpush1.msra.mxu0 0.0
    %436 = vmatprep.subr.mxu0 0.0
    %437 = vmatpush1.msra.mxu0 0.0
    %438 = vmatprep.subr.mxu0 0.0
    %439 = vmatpush1.msra.mxu0 0.0
    %440 = vmatprep.subr.mxu0 0.0
    %441 = vmatpush1.msra.mxu0 0.0
    %442 = vmatprep.subr.mxu0 0.0
    %443 = vmatpush1.msra.mxu0 0.0
    %444 = vmatprep.subr.mxu0 0.0
    %445 = vmatpush1.msra.mxu0 0.0
    %446 = vmatprep.subr.mxu0 0.0
    %447 = vmatpush1.msra.mxu0 0.0
    %448 = vmatprep.subr.mxu0 0.0
    %449 = vmatpush1.msra.mxu0 0.0
    %450 = vmatprep.subr.mxu0 0.0
    %451 = vmatpush1.msra.mxu0 0.0
    %452 = vmatprep.subr.mxu0 0.0
    %453 = vmatpush1.msra.mxu0 0.0
    %454 = vmatprep.subr.mxu0 0.0
    %455 = vmatpush1.msra.mxu0 0.0
    %456 = vmatprep.subr.mxu0 0.0
    %457 = vmatpush1.msra.mxu0 0.0
    %458 = vmatprep.subr.mxu0 0.0
    %459 = vmatpush1.msra.mxu0 0.0
    %460 = vmatprep.subr.mxu0 0.0
    %461 = vmatpush1.msra.mxu0 0.0
    %462 = vmatprep.subr.mxu0 0.0
    %463 = vmatpush1.msra.mxu0 0.0
    %464 = vmatprep.subr.mxu0 0.0
    %465 = vmatpush1.msra.mxu0 0.0
    %466 = vmatprep.subr.mxu0 0.0
    %467 = vmatpush1.msra.mxu0 0.0
    %468 = vmatprep.subr.mxu0 0.0
    %469 = vmatpush1.msra.mxu0 0.0
    %470 = vmatprep.subr.mxu0 0.0
    %471 = vmatpush1.msra.mxu0 0.0
    %472 = vmatprep.subr.mxu0 0.0
    %473 = vmatpush1.msra.mxu0 0.0
    %474 = vmatprep.subr.mxu0 0.0
    %475 = vmatpush1.msra.mxu0 0.0
    %476 = vmatprep.subr.mxu0 0.0
    %477 = vmatpush1.msra.mxu0 0.0
    %478 = vmatprep.subr.mxu0 0.0
    %479 = vmatpush1.msra.mxu0 0.0
    %480 = vmatprep.subr.mxu0 0.0
    %481 = vmatpush1.msra.mxu0 0.0
    %482 = vmatprep.subr.mxu0 0.0
    %483 = vmatpush1.msra.mxu0 0.0
    %484 = vmatprep.subr.mxu0 0.0
    %485 = vmatpush1.msra.mxu0 0.0
    %486 = vmatprep.subr.mxu0 0.0
    %487 = vmatpush1.msra.mxu0 0.0
    %488 = vmatprep.subr.mxu0 0.0
    %489 = vmatpush1.msra.mxu0 0.0
    %490 = vmatprep.subr.mxu0 0.0
    %491 = vmatpush1.msra.mxu0 0.0
    %492 = vmatprep.subr.mxu0 0.0
    %493 = vmatpush1.msra.mxu0 0.0
    %494 = vmatprep.subr.mxu0 0.0
    %495 = vmatpush1.msra.mxu0 0.0
    %496 = vmatprep.mubr.f32.mxu0 0.0
    %497 = vmatmul.mubr.f32.gmra.mrb[0].mxu0 %v423
    %v498 = vpop.f32.mrb[0].mxu0
    %v499 = vadd.f32 0.0, %v498
    %v500 = vpop.f32.mrb[0].mxu0
    %501 = vmatprep.mubr.f32.mxu0 0.0
    %502 = vmatmul.mubr.f32.gmra.mrb[0].mxu0 %v426
    %v503 = vpop.f32.mrb[0].mxu0
    %v504 = vadd.f32 0.0, %v503
    %v505 = vpop.f32.mrb[0].mxu0
    %506 = vdwg.mxu0
    %v507 = vld [vmem:[%s2] sm:$0xff]
    %v508 = vld [vmem:[%s2 + $0x8] sm:$0xff]
    %v509 = vld [vmem:[%s9] sm:$0xff]
    %v510 = vld [vmem:[%s9 + $0x8] sm:$0xff]
    %v511 = vld [vmem:[%s9 + $0x10] sm:$0xff]
    %v512 = vld [vmem:[%s9 + $0x18] sm:$0xff]
    %v513 = vld [vmem:[#allocation11] sm:$0x1]
    %v515 = vlaneseq
    %v516 = vshrl.u32 %v515, 7
    %v517 = vsub.s32 0, %v516
    %v518 = vrot.slane %v513, %v517
    %v521 = vsel %vm347, %v507, 0
    %v524 = vsel %vm347, %v508, 0
    %526 = vmatprep.subr.mxu0 0.0
    %527 = vmatpush1.msra.mxu0 %v509
    %528 = vmatprep.subr.mxu0 0.0
    %529 = vmatpush1.msra.mxu0 %v510
    %530 = vmatprep.subr.mxu0 0.0
    %531 = vmatpush1.msra.mxu0 %v511
    %532 = vmatprep.subr.mxu0 0.0
    %533 = vmatpush1.msra.mxu0 %v512
    %534 = vmatprep.subr.mxu0 0.0
    %535 = vmatpush1.msra.mxu0 0.0
    %536 = vmatprep.subr.mxu0 0.0
    %537 = vmatpush1.msra.mxu0 0.0
    %538 = vmatprep.subr.mxu0 0.0
    %539 = vmatpush1.msra.mxu0 0.0
    %540 = vmatprep.subr.mxu0 0.0
    %541 = vmatpush1.msra.mxu0 0.0
    %542 = vmatprep.subr.mxu0 0.0
    %543 = vmatpush1.msra.mxu0 0.0
    %544 = vmatprep.subr.mxu0 0.0
    %545 = vmatpush1.msra.mxu0 0.0
    %546 = vmatprep.subr.mxu0 0.0
    %547 = vmatpush1.msra.mxu0 0.0
    %548 = vmatprep.subr.mxu0 0.0
    %549 = vmatpush1.msra.mxu0 0.0
    %550 = vmatprep.subr.mxu0 0.0
    %551 = vmatpush1.msra.mxu0 0.0
    %552 = vmatprep.subr.mxu0 0.0
    %553 = vmatpush1.msra.mxu0 0.0
    %554 = vmatprep.subr.mxu0 0.0
    %555 = vmatpush1.msra.mxu0 0.0
    %556 = vmatprep.subr.mxu0 0.0
    %557 = vmatpush1.msra.mxu0 0.0
    %558 = vmatprep.subr.mxu0 0.0
    %559 = vmatpush1.msra.mxu0 0.0
    %560 = vmatprep.subr.mxu0 0.0
    %561 = vmatpush1.msra.mxu0 0.0
    %562 = vmatprep.subr.mxu0 0.0
    %563 = vmatpush1.msra.mxu0 0.0
    %564 = vmatprep.subr.mxu0 0.0
    %565 = vmatpush1.msra.mxu0 0.0
    %566 = vmatprep.subr.mxu0 0.0
    %567 = vmatpush1.msra.mxu0 0.0
    %568 = vmatprep.subr.mxu0 0.0
    %569 = vmatpush1.msra.mxu0 0.0
    %570 = vmatprep.subr.mxu0 0.0
    %571 = vmatpush1.msra.mxu0 0.0
    %572 = vmatprep.subr.mxu0 0.0
    %573 = vmatpush1.msra.mxu0 0.0
    %574 = vmatprep.subr.mxu0 0.0
    %575 = vmatpush1.msra.mxu0 0.0
    %576 = vmatprep.subr.mxu0 0.0
    %577 = vmatpush1.msra.mxu0 0.0
    %578 = vmatprep.subr.mxu0 0.0
    %579 = vmatpush1.msra.mxu0 0.0
    %580 = vmatprep.subr.mxu0 0.0
    %581 = vmatpush1.msra.mxu0 0.0
    %582 = vmatprep.subr.mxu0 0.0
    %583 = vmatpush1.msra.mxu0 0.0
    %584 = vmatprep.subr.mxu0 0.0
    %585 = vmatpush1.msra.mxu0 0.0
    %586 = vmatprep.subr.mxu0 0.0
    %587 = vmatpush1.msra.mxu0 0.0
    %588 = vmatprep.subr.mxu0 0.0
    %589 = vmatpush1.msra.mxu0 0.0
    %590 = vmatprep.mubr.f32.mxu0 0.0
    %591 = vmatmul.mubr.f32.gmra.mrb[0].mxu0 %v521
    %v592 = vpop.f32.mrb[0].mxu0
    %v593 = vadd.f32 %v518, %v592
    %v594 = vpop.f32.mrb[0].mxu0
    %595 = vmatprep.mubr.f32.mxu0 0.0
    %596 = vmatmul.mubr.f32.gmra.mrb[0].mxu0 %v524
    %v597 = vpop.f32.mrb[0].mxu0
    %v598 = vadd.f32 %v518, %v597
    %v599 = vpop.f32.mrb[0].mxu0
    %600 = vdwg.mxu0
    %v601 = vadd.f32 %v593, %v499
    %v602 = vadd.f32 %v598, %v504
    %v603 = vtanh.pop %v601
    %v604 = vtanh.pop %v602
    %v605 = vld [vmem:[%s11] sm:$0xff]
    %v606 = vld [vmem:[%s11 + $0x8] sm:$0xff]
    %v607 = vld [vmem:[%s11 + $0x10] sm:$0xff]
    %v608 = vld [vmem:[%s11 + $0x18] sm:$0xff]
    %v609 = vld [vmem:[#allocation2] sm:$0x1]
    %v611 = vlaneseq
    %v612 = vshrl.u32 %v611, 7
    %v613 = vsub.s32 0, %v612
    %v614 = vrot.slane %v609, %v613
    %v617 = vsel %vm347, %v603, 0
    %v620 = vsel %vm347, %v604, 0
    %622 = vmatprep.subr.mxu0 0.0
    %623 = vmatpush1.msra.mxu0 %v605
    %624 = vmatprep.subr.mxu0 0.0
    %625 = vmatpush1.msra.mxu0 %v606
    %626 = vmatprep.subr.mxu0 0.0
    %627 = vmatpush1.msra.mxu0 %v607
    %628 = vmatprep.subr.mxu0 0.0
    %629 = vmatpush1.msra.mxu0 %v608
    %630 = vmatprep.subr.mxu0 0.0
    %631 = vmatpush1.msra.mxu0 0.0
    %632 = vmatprep.subr.mxu0 0.0
    %633 = vmatpush1.msra.mxu0 0.0
    %634 = vmatprep.subr.mxu0 0.0
    %635 = vmatpush1.msra.mxu0 0.0
    %636 = vmatprep.subr.mxu0 0.0
    %637 = vmatpush1.msra.mxu0 0.0
    %638 = vmatprep.subr.mxu0 0.0
    %639 = vmatpush1.msra.mxu0 0.0
    %640 = vmatprep.subr.mxu0 0.0
    %641 = vmatpush1.msra.mxu0 0.0
    %642 = vmatprep.subr.mxu0 0.0
    %643 = vmatpush1.msra.mxu0 0.0
    %644 = vmatprep.subr.mxu0 0.0
    %645 = vmatpush1.msra.mxu0 0.0
    %646 = vmatprep.subr.mxu0 0.0
    %647 = vmatpush1.msra.mxu0 0.0
    %648 = vmatprep.subr.mxu0 0.0
    %649 = vmatpush1.msra.mxu0 0.0
    %650 = vmatprep.subr.mxu0 0.0
    %651 = vmatpush1.msra.mxu0 0.0
    %652 = vmatprep.subr.mxu0 0.0
    %653 = vmatpush1.msra.mxu0 0.0
    %654 = vmatprep.subr.mxu0 0.0
    %655 = vmatpush1.msra.mxu0 0.0
    %656 = vmatprep.subr.mxu0 0.0
    %657 = vmatpush1.msra.mxu0 0.0
    %658 = vmatprep.subr.mxu0 0.0
    %659 = vmatpush1.msra.mxu0 0.0
    %660 = vmatprep.subr.mxu0 0.0
    %661 = vmatpush1.msra.mxu0 0.0
    %662 = vmatprep.subr.mxu0 0.0
    %663 = vmatpush1.msra.mxu0 0.0
    %664 = vmatprep.subr.mxu0 0.0
    %665 = vmatpush1.msra.mxu0 0.0
    %666 = vmatprep.subr.mxu0 0.0
    %667 = vmatpush1.msra.mxu0 0.0
    %668 = vmatprep.subr.mxu0 0.0
    %669 = vmatpush1.msra.mxu0 0.0
    %670 = vmatprep.subr.mxu0 0.0
    %671 = vmatpush1.msra.mxu0 0.0
    %672 = vmatprep.subr.mxu0 0.0
    %673 = vmatpush1.msra.mxu0 0.0
    %674 = vmatprep.subr.mxu0 0.0
    %675 = vmatpush1.msra.mxu0 0.0
    %676 = vmatprep.subr.mxu0 0.0
    %677 = vmatpush1.msra.mxu0 0.0
    %678 = vmatprep.subr.mxu0 0.0
    %679 = vmatpush1.msra.mxu0 0.0
    %680 = vmatprep.subr.mxu0 0.0
    %681 = vmatpush1.msra.mxu0 0.0
    %682 = vmatprep.subr.mxu0 0.0
    %683 = vmatpush1.msra.mxu0 0.0
    %684 = vmatprep.subr.mxu0 0.0
    %685 = vmatpush1.msra.mxu0 0.0
    %686 = vmatprep.mubr.f32.mxu0 0.0
    %687 = vmatmul.mubr.f32.gmra.mrb[0].mxu0 %v617
    %v688 = vpop.f32.mrb[0].mxu0
    %v689 = vadd.f32 %v614, %v688
    %v690 = vpop.f32.mrb[0].mxu0
    %691 = vmatprep.mubr.f32.mxu0 0.0
    %692 = vmatmul.mubr.f32.gmra.mrb[0].mxu0 %v620
    %v693 = vpop.f32.mrb[0].mxu0
    %v694 = vadd.f32 %v614, %v693
    %v695 = vpop.f32.mrb[0].mxu0
    %696 = vdwg.mxu0
    %vm697 = vcmp.gt.f32.partialorder %v332, 0.0
    %vm698 = vcmp.gt.f32.partialorder %v333, 0.0
    %700 = vset.pattern.permute.xlu0 0
    %701 = vperm.xlu0 %700, %v689
    %v702 = vpop.permute.xlu0 %701
    %705 = vset.pattern.permute.xlu0 0
    %706 = vperm.xlu0 %705, %v694
    %v707 = vpop.permute.xlu0 %706
    %v709 = vsel %vm697, %v702, -1e+30
    %v710 = vsel %vm698, %v707, -1e+30
    %v711 = vsel %vm421, %v709, -inf
    %v712 = vsel %vm421, %v710, -inf
    %v713 = vmax.f32 %v711, %v712
    %v714 = vrot.slane %v713, 4
    %v715 = vmax.f32 %v713, %v714
    %v716 = vrot.slane %v715, 2
    %v717 = vmax.f32 %v715, %v716
    %v718 = vrot.slane %v717, 1
    %v719 = vmax.f32 %v717, %v718
    %v720 = vmul.f32 %v332, %v719
    %v721 = vmul.f32 %v333, %v719
    %v722 = vsel %vm421, %v720, 0.0
    %723 = vadd.xlane.f32.xlu0 %v722
    %v724 = vpop.xlane.xlu0 %723
    %v725 = vsel %vm421, %v721, 0.0
    %726 = vadd.xlane.f32.xlu0 %v725
    %v727 = vpop.xlane.xlu0 %726
    %v728 = vsub.f32 %v689, %v724
    %v729 = vsub.f32 %v694, %v727
    %v730 = vmul.f32 %v728, 1.442695
    %v731 = vpow.pop %v730
    %v732 = vmul.f32 %v729, 1.442695
    %v733 = vpow.pop %v732
    %735 = vset.pattern.permute.xlu0 0
    %736 = vperm.xlu0 %735, %v731
    %v737 = vpop.permute.xlu0 %736
    %740 = vset.pattern.permute.xlu0 0
    %741 = vperm.xlu0 %740, %v733
    %v742 = vpop.permute.xlu0 %741
    %v744 = vmul.f32 %v332, %v737
    %v745 = vmul.f32 %v333, %v742
    %v746 = vsel %vm421, %v744, 0.0
    %v747 = vsel %vm421, %v745, 0.0
    %v748 = vadd.f32 %v746, %v747
    %v749 = vrot.slane %v748, 4
    %v750 = vadd.f32 %v748, %v749
    %v751 = vrot.slane %v750, 2
    %v752 = vadd.f32 %v750, %v751
    %v753 = vrot.slane %v752, 1
    %v754 = vadd.f32 %v752, %v753
    %v755 = vmul.f32 %v332, %v754
    %v756 = vmul.f32 %v333, %v754
    %v757 = vsel %vm421, %v755, 0.0
    %758 = vadd.xlane.f32.xlu0 %v757
    %v759 = vpop.xlane.xlu0 %758
    %v760 = vsel %vm421, %v756, 0.0
    %761 = vadd.xlane.f32.xlu0 %v760
    %v762 = vpop.xlane.xlu0 %761
    %v763 = vrcp.pop %v759
    %v764 = vmul.f32 %v731, %v763
    %v765 = vrcp.pop %v762
    %v766 = vmul.f32 %v733, %v765
    %v767 = vld [vmem:[%s5] sm:$0x3]
    %769 = vset.pattern.permute.xlu0 0
    %770 = vperm.xlu0 %769, %v764
    %v771 = vpop.permute.xlu0 %770
    %774 = vset.pattern.permute.xlu0 0
    %775 = vperm.xlu0 %774, %v766
    %v776 = vpop.permute.xlu0 %775
    %v778 = vmul.f32 %v771, %v507
    %v779 = vmul.f32 %v776, %v508
    %v781 = vsel %vm257, %v767, 0
    %783 = vmatprep.subr.mxu0 0.0
    %784 = vmatpush1.msra.mxu0 %v778
    %785 = vmatprep.subr.mxu0 0.0
    %786 = vmatpush1.msra.mxu0 %v779
    %787 = vmatprep.subr.mxu0 0.0
    %788 = vmatpush1.msra.mxu0 0.0
    %789 = vmatprep.subr.mxu0 0.0
    %790 = vmatpush1.msra.mxu0 0.0
    %791 = vmatprep.subr.mxu0 0.0
    %792 = vmatpush1.msra.mxu0 0.0
    %793 = vmatprep.subr.mxu0 0.0
    %794 = vmatpush1.msra.mxu0 0.0
    %795 = vmatprep.subr.mxu0 0.0
    %796 = vmatpush1.msra.mxu0 0.0
    %797 = vmatprep.subr.mxu0 0.0
    %798 = vmatpush1.msra.mxu0 0.0
    %799 = vmatprep.subr.mxu0 0.0
    %800 = vmatpush1.msra.mxu0 0.0
    %801 = vmatprep.subr.mxu0 0.0
    %802 = vmatpush1.msra.mxu0 0.0
    %803 = vmatprep.subr.mxu0 0.0
    %804 = vmatpush1.msra.mxu0 0.0
    %805 = vmatprep.subr.mxu0 0.0
    %806 = vmatpush1.msra.mxu0 0.0
    %807 = vmatprep.subr.mxu0 0.0
    %808 = vmatpush1.msra.mxu0 0.0
    %809 = vmatprep.subr.mxu0 0.0
    %810 = vmatpush1.msra.mxu0 0.0
    %811 = vmatprep.subr.mxu0 0.0
    %812 = vmatpush1.msra.mxu0 0.0
    %813 = vmatprep.subr.mxu0 0.0
    %814 = vmatpush1.msra.mxu0 0.0
    %815 = vmatprep.subr.mxu0 0.0
    %816 = vmatpush1.msra.mxu0 0.0
    %817 = vmatprep.subr.mxu0 0.0
    %818 = vmatpush1.msra.mxu0 0.0
    %819 = vmatprep.subr.mxu0 0.0
    %820 = vmatpush1.msra.mxu0 0.0
    %821 = vmatprep.subr.mxu0 0.0
    %822 = vmatpush1.msra.mxu0 0.0
    %823 = vmatprep.subr.mxu0 0.0
    %824 = vmatpush1.msra.mxu0 0.0
    %825 = vmatprep.subr.mxu0 0.0
    %826 = vmatpush1.msra.mxu0 0.0
    %827 = vmatprep.subr.mxu0 0.0
    %828 = vmatpush1.msra.mxu0 0.0
    %829 = vmatprep.subr.mxu0 0.0
    %830 = vmatpush1.msra.mxu0 0.0
    %831 = vmatprep.subr.mxu0 0.0
    %832 = vmatpush1.msra.mxu0 0.0
    %833 = vmatprep.subr.mxu0 0.0
    %834 = vmatpush1.msra.mxu0 0.0
    %835 = vmatprep.subr.mxu0 0.0
    %836 = vmatpush1.msra.mxu0 0.0
    %837 = vmatprep.subr.mxu0 0.0
    %838 = vmatpush1.msra.mxu0 0.0
    %839 = vmatprep.subr.mxu0 0.0
    %840 = vmatpush1.msra.mxu0 0.0
    %841 = vmatprep.subr.mxu0 0.0
    %842 = vmatpush1.msra.mxu0 0.0
    %843 = vmatprep.subr.mxu0 0.0
    %844 = vmatpush1.msra.mxu0 0.0
    %845 = vmatprep.subr.mxu0 0.0
    %846 = vmatpush1.msra.mxu0 0.0
    %847 = vmatprep.mubr.f32.mxu0 0.0
    %848 = vmatmul.mubr.f32.gmra.mrb[0].mxu0 %v781
    %v849 = vpop.f32.mrb[0].mxu0
    %v850 = vadd.f32 0.0, %v849
    %v851 = vpop.f32.mrb[0].mxu0
    %852 = vdwg.mxu0
    %v853 = vld [vmem:[%s6] sm:$0xff]
    %v854 = vld [vmem:[%s6 + $0x8] sm:$0xff]
    %v855 = vmul.f32 %v771, %v853
    %v856 = vmul.f32 %v776, %v854
    %857 = vmatprep.subr.mxu0 0.0
    %858 = vmatpush1.msra.mxu0 %v855
    %859 = vmatprep.subr.mxu0 0.0
    %860 = vmatpush1.msra.mxu0 %v856
    %861 = vmatprep.subr.mxu0 0.0
    %862 = vmatpush1.msra.mxu0 0.0
    %863 = vmatprep.subr.mxu0 0.0
    %864 = vmatpush1.msra.mxu0 0.0
    %865 = vmatprep.subr.mxu0 0.0
    %866 = vmatpush1.msra.mxu0 0.0
    %867 = vmatprep.subr.mxu0 0.0
    %868 = vmatpush1.msra.mxu0 0.0
    %869 = vmatprep.subr.mxu0 0.0
    %870 = vmatpush1.msra.mxu0 0.0
    %871 = vmatprep.subr.mxu0 0.0
    %872 = vmatpush1.msra.mxu0 0.0
    %873 = vmatprep.subr.mxu0 0.0
    %874 = vmatpush1.msra.mxu0 0.0
    %875 = vmatprep.subr.mxu0 0.0
    %876 = vmatpush1.msra.mxu0 0.0
    %877 = vmatprep.subr.mxu0 0.0
    %878 = vmatpush1.msra.mxu0 0.0
    %879 = vmatprep.subr.mxu0 0.0
    %880 = vmatpush1.msra.mxu0 0.0
    %881 = vmatprep.subr.mxu0 0.0
    %882 = vmatpush1.msra.mxu0 0.0
    %883 = vmatprep.subr.mxu0 0.0
    %884 = vmatpush1.msra.mxu0 0.0
    %885 = vmatprep.subr.mxu0 0.0
    %886 = vmatpush1.msra.mxu0 0.0
    %887 = vmatprep.subr.mxu0 0.0
    %888 = vmatpush1.msra.mxu0 0.0
    %889 = vmatprep.subr.mxu0 0.0
    %890 = vmatpush1.msra.mxu0 0.0
    %891 = vmatprep.subr.mxu0 0.0
    %892 = vmatpush1.msra.mxu0 0.0
    %893 = vmatprep.subr.mxu0 0.0
    %894 = vmatpush1.msra.mxu0 0.0
    %895 = vmatprep.subr.mxu0 0.0
    %896 = vmatpush1.msra.mxu0 0.0
    %897 = vmatprep.subr.mxu0 0.0
    %898 = vmatpush1.msra.mxu0 0.0
    %899 = vmatprep.subr.mxu0 0.0
    %900 = vmatpush1.msra.mxu0 0.0
    %901 = vmatprep.subr.mxu0 0.0
    %902 = vmatpush1.msra.mxu0 0.0
    %903 = vmatprep.subr.mxu0 0.0
    %904 = vmatpush1.msra.mxu0 0.0
    %905 = vmatprep.subr.mxu0 0.0
    %906 = vmatpush1.msra.mxu0 0.0
    %907 = vmatprep.subr.mxu0 0.0
    %908 = vmatpush1.msra.mxu0 0.0
    %909 = vmatprep.subr.mxu0 0.0
    %910 = vmatpush1.msra.mxu0 0.0
    %911 = vmatprep.subr.mxu0 0.0
    %912 = vmatpush1.msra.mxu0 0.0
    %913 = vmatprep.subr.mxu0 0.0
    %914 = vmatpush1.msra.mxu0 0.0
    %915 = vmatprep.subr.mxu0 0.0
    %916 = vmatpush1.msra.mxu0 0.0
    %917 = vmatprep.subr.mxu0 0.0
    %918 = vmatpush1.msra.mxu0 0.0
    %919 = vmatprep.subr.mxu0 0.0
    %920 = vmatpush1.msra.mxu0 0.0
    %921 = vmatprep.mubr.f32.mxu0 0.0
    %922 = vmatmul.mubr.f32.gmra.mrb[0].mxu0 %v781
    %v923 = vpop.f32.mrb[0].mxu0
    %v924 = vadd.f32 0.0, %v923
    %v925 = vpop.f32.mrb[0].mxu0
    %926 = vdwg.mxu0
    %vm927 = vcmask 58368
    %928 = vst.msk [vmem:[#allocation27] sm:$0x3] %vm927, %v924
    %v929 = vld [vmem:[#allocation6] sm:$0x3]
    %v930 = vld [vmem:[#allocation14] sm:$0xff]
    %v931 = vld [vmem:[#allocation14 + $0x8] sm:$0xff]
    %v932 = vld [vmem:[%s16] sm:$0xff]
    %v933 = vld [vmem:[%s16 + $0x8] sm:$0xff]
    %v934 = vld [vmem:[%s16 + $0x10] sm:$0xff]
    %v935 = vld [vmem:[%s16 + $0x18] sm:$0xff]
    %v937 = vsel %vm347, %v850, 0
    %939 = vmatprep.subr.mxu0 0.0
    %940 = vmatpush1.msra.mxu0 %v932
    %941 = vmatprep.subr.mxu0 0.0
    %942 = vmatpush1.msra.mxu0 %v933
    %943 = vmatprep.subr.mxu0 0.0
    %944 = vmatpush1.msra.mxu0 %v934
    %945 = vmatprep.subr.mxu0 0.0
    %946 = vmatpush1.msra.mxu0 %v935
    %947 = vmatprep.subr.mxu0 0.0
    %948 = vmatpush1.msra.mxu0 0.0
    %949 = vmatprep.subr.mxu0 0.0
    %950 = vmatpush1.msra.mxu0 0.0
    %951 = vmatprep.subr.mxu0 0.0
    %952 = vmatpush1.msra.mxu0 0.0
    %953 = vmatprep.subr.mxu0 0.0
    %954 = vmatpush1.msra.mxu0 0.0
    %955 = vmatprep.subr.mxu0 0.0
    %956 = vmatpush1.msra.mxu0 0.0
    %957 = vmatprep.subr.mxu0 0.0
    %958 = vmatpush1.msra.mxu0 0.0
    %959 = vmatprep.subr.mxu0 0.0
    %960 = vmatpush1.msra.mxu0 0.0
    %961 = vmatprep.subr.mxu0 0.0
    %962 = vmatpush1.msra.mxu0 0.0
    %963 = vmatprep.subr.mxu0 0.0
    %964 = vmatpush1.msra.mxu0 0.0
    %965 = vmatprep.subr.mxu0 0.0
    %966 = vmatpush1.msra.mxu0 0.0
    %967 = vmatprep.subr.mxu0 0.0
    %968 = vmatpush1.msra.mxu0 0.0
    %969 = vmatprep.subr.mxu0 0.0
    %970 = vmatpush1.msra.mxu0 0.0
    %971 = vmatprep.subr.mxu0 0.0
    %972 = vmatpush1.msra.mxu0 0.0
    %973 = vmatprep.subr.mxu0 0.0
    %974 = vmatpush1.msra.mxu0 0.0
    %975 = vmatprep.subr.mxu0 0.0
    %976 = vmatpush1.msra.mxu0 0.0
    %977 = vmatprep.subr.mxu0 0.0
    %978 = vmatpush1.msra.mxu0 0.0
    %979 = vmatprep.subr.mxu0 0.0
    %980 = vmatpush1.msra.mxu0 0.0
    %981 = vmatprep.subr.mxu0 0.0
    %982 = vmatpush1.msra.mxu0 0.0
    %983 = vmatprep.subr.mxu0 0.0
    %984 = vmatpush1.msra.mxu0 0.0
    %985 = vmatprep.subr.mxu0 0.0
    %986 = vmatpush1.msra.mxu0 0.0
    %987 = vmatprep.subr.mxu0 0.0
    %988 = vmatpush1.msra.mxu0 0.0
    %989 = vmatprep.subr.mxu0 0.0
    %990 = vmatpush1.msra.mxu0 0.0
    %991 = vmatprep.subr.mxu0 0.0
    %992 = vmatpush1.msra.mxu0 0.0
    %993 = vmatprep.subr.mxu0 0.0
    %994 = vmatpush1.msra.mxu0 0.0
    %995 = vmatprep.subr.mxu0 0.0
    %996 = vmatpush1.msra.mxu0 0.0
    %997 = vmatprep.subr.mxu0 0.0
    %998 = vmatpush1.msra.mxu0 0.0
    %999 = vmatprep.subr.mxu0 0.0
    %1000 = vmatpush1.msra.mxu0 0.0
    %1001 = vmatprep.subr.mxu0 0.0
    %1002 = vmatpush1.msra.mxu0 0.0
    %1003 = vmatprep.mubr.f32.mxu0 0.0
    %1004 = vmatmul.mubr.f32.gmra.mrb[0].mxu0 %v937
    %v1005 = vpop.f32.mrb[0].mxu0
    %v1006 = vadd.f32 0.0, %v1005
    %v1007 = vpop.f32.mrb[0].mxu0
    %1008 = vdwg.mxu0
    %v1010 = vsel %vm257, %v331, 0
    %1012 = vmatprep.subr.mxu0 0.0
    %1013 = vmatpush1.msra.mxu0 %v930
    %1014 = vmatprep.subr.mxu0 0.0
    %1015 = vmatpush1.msra.mxu0 %v931
    %1016 = vmatprep.subr.mxu0 0.0
    %1017 = vmatpush1.msra.mxu0 0.0
    %1018 = vmatprep.subr.mxu0 0.0
    %1019 = vmatpush1.msra.mxu0 0.0
    %1020 = vmatprep.subr.mxu0 0.0
    %1021 = vmatpush1.msra.mxu0 0.0
    %1022 = vmatprep.subr.mxu0 0.0
    %1023 = vmatpush1.msra.mxu0 0.0
    %1024 = vmatprep.subr.mxu0 0.0
    %1025 = vmatpush1.msra.mxu0 0.0
    %1026 = vmatprep.subr.mxu0 0.0
    %1027 = vmatpush1.msra.mxu0 0.0
    %1028 = vmatprep.subr.mxu0 0.0
    %1029 = vmatpush1.msra.mxu0 0.0
    %1030 = vmatprep.subr.mxu0 0.0
    %1031 = vmatpush1.msra.mxu0 0.0
    %1032 = vmatprep.subr.mxu0 0.0
    %1033 = vmatpush1.msra.mxu0 0.0
    %1034 = vmatprep.subr.mxu0 0.0
    %1035 = vmatpush1.msra.mxu0 0.0
    %1036 = vmatprep.subr.mxu0 0.0
    %1037 = vmatpush1.msra.mxu0 0.0
    %1038 = vmatprep.subr.mxu0 0.0
    %1039 = vmatpush1.msra.mxu0 0.0
    %1040 = vmatprep.subr.mxu0 0.0
    %1041 = vmatpush1.msra.mxu0 0.0
    %1042 = vmatprep.subr.mxu0 0.0
    %1043 = vmatpush1.msra.mxu0 0.0
    %1044 = vmatprep.subr.mxu0 0.0
    %1045 = vmatpush1.msra.mxu0 0.0
    %1046 = vmatprep.subr.mxu0 0.0
    %1047 = vmatpush1.msra.mxu0 0.0
    %1048 = vmatprep.subr.mxu0 0.0
    %1049 = vmatpush1.msra.mxu0 0.0
    %1050 = vmatprep.subr.mxu0 0.0
    %1051 = vmatpush1.msra.mxu0 0.0
    %1052 = vmatprep.subr.mxu0 0.0
    %1053 = vmatpush1.msra.mxu0 0.0
    %1054 = vmatprep.subr.mxu0 0.0
    %1055 = vmatpush1.msra.mxu0 0.0
    %1056 = vmatprep.subr.mxu0 0.0
    %1057 = vmatpush1.msra.mxu0 0.0
    %1058 = vmatprep.subr.mxu0 0.0
    %1059 = vmatpush1.msra.mxu0 0.0
    %1060 = vmatprep.subr.mxu0 0.0
    %1061 = vmatpush1.msra.mxu0 0.0
    %1062 = vmatprep.subr.mxu0 0.0
    %1063 = vmatpush1.msra.mxu0 0.0
    %1064 = vmatprep.subr.mxu0 0.0
    %1065 = vmatpush1.msra.mxu0 0.0
    %1066 = vmatprep.subr.mxu0 0.0
    %1067 = vmatpush1.msra.mxu0 0.0
    %1068 = vmatprep.subr.mxu0 0.0
    %1069 = vmatpush1.msra.mxu0 0.0
    %1070 = vmatprep.subr.mxu0 0.0
    %1071 = vmatpush1.msra.mxu0 0.0
    %1072 = vmatprep.subr.mxu0 0.0
    %1073 = vmatpush1.msra.mxu0 0.0
    %1074 = vmatprep.subr.mxu0 0.0
    %1075 = vmatpush1.msra.mxu0 0.0
    %1076 = vmatprep.mubr.f32.mxu0 0.0
    %1077 = vmatmul.mubr.f32.gmra.mrb[0].mxu0 %v1010
    %v1078 = vpop.f32.mrb[0].mxu0
    %v1079 = vadd.f32 %v1006, %v1078
    %v1080 = vpop.f32.mrb[0].mxu0
    %1081 = vdwg.mxu0
    %v1082 = vld [vmem:[#allocation17] sm:$0x1]
    %v1084 = vlaneseq
    %v1085 = vshrl.u32 %v1084, 7
    %v1086 = vsub.s32 0, %v1085
    %v1087 = vrot.slane %v1082, %v1086
    %v1089 = vadd.f32 %v1079, %v1087
    %v1090 = vld [vmem:[#allocation15] sm:$0xff]
    %v1091 = vld [vmem:[#allocation15 + $0x8] sm:$0xff]
    %v1092 = vld [vmem:[#allocation15 + $0x10] sm:$0xff]
    %v1093 = vld [vmem:[#allocation15 + $0x18] sm:$0xff]
    %v1094 = vld [vmem:[#allocation18] sm:$0x1]
    %v1096 = vlaneseq
    %v1097 = vshrl.u32 %v1096, 7
    %v1098 = vsub.s32 0, %v1097
    %v1099 = vrot.slane %v1094, %v1098
    %v1102 = vsel %vm347, %v929, 0
    %1104 = vmatprep.subr.mxu0 0.0
    %1105 = vmatpush1.msra.mxu0 %v1090
    %1106 = vmatprep.subr.mxu0 0.0
    %1107 = vmatpush1.msra.mxu0 %v1091
    %1108 = vmatprep.subr.mxu0 0.0
    %1109 = vmatpush1.msra.mxu0 %v1092
    %1110 = vmatprep.subr.mxu0 0.0
    %1111 = vmatpush1.msra.mxu0 %v1093
    %1112 = vmatprep.subr.mxu0 0.0
    %1113 = vmatpush1.msra.mxu0 0.0
    %1114 = vmatprep.subr.mxu0 0.0
    %1115 = vmatpush1.msra.mxu0 0.0
    %1116 = vmatprep.subr.mxu0 0.0
    %1117 = vmatpush1.msra.mxu0 0.0
    %1118 = vmatprep.subr.mxu0 0.0
    %1119 = vmatpush1.msra.mxu0 0.0
    %1120 = vmatprep.subr.mxu0 0.0
    %1121 = vmatpush1.msra.mxu0 0.0
    %1122 = vmatprep.subr.mxu0 0.0
    %1123 = vmatpush1.msra.mxu0 0.0
    %1124 = vmatprep.subr.mxu0 0.0
    %1125 = vmatpush1.msra.mxu0 0.0
    %1126 = vmatprep.subr.mxu0 0.0
    %1127 = vmatpush1.msra.mxu0 0.0
    %1128 = vmatprep.subr.mxu0 0.0
    %1129 = vmatpush1.msra.mxu0 0.0
    %1130 = vmatprep.subr.mxu0 0.0
    %1131 = vmatpush1.msra.mxu0 0.0
    %1132 = vmatprep.subr.mxu0 0.0
    %1133 = vmatpush1.msra.mxu0 0.0
    %1134 = vmatprep.subr.mxu0 0.0
    %1135 = vmatpush1.msra.mxu0 0.0
    %1136 = vmatprep.subr.mxu0 0.0
    %1137 = vmatpush1.msra.mxu0 0.0
    %1138 = vmatprep.subr.mxu0 0.0
    %1139 = vmatpush1.msra.mxu0 0.0
    %1140 = vmatprep.subr.mxu0 0.0
    %1141 = vmatpush1.msra.mxu0 0.0
    %1142 = vmatprep.subr.mxu0 0.0
    %1143 = vmatpush1.msra.mxu0 0.0
    %1144 = vmatprep.subr.mxu0 0.0
    %1145 = vmatpush1.msra.mxu0 0.0
    %1146 = vmatprep.subr.mxu0 0.0
    %1147 = vmatpush1.msra.mxu0 0.0
    %1148 = vmatprep.subr.mxu0 0.0
    %1149 = vmatpush1.msra.mxu0 0.0
    %1150 = vmatprep.subr.mxu0 0.0
    %1151 = vmatpush1.msra.mxu0 0.0
    %1152 = vmatprep.subr.mxu0 0.0
    %1153 = vmatpush1.msra.mxu0 0.0
    %1154 = vmatprep.subr.mxu0 0.0
    %1155 = vmatpush1.msra.mxu0 0.0
    %1156 = vmatprep.subr.mxu0 0.0
    %1157 = vmatpush1.msra.mxu0 0.0
    %1158 = vmatprep.subr.mxu0 0.0
    %1159 = vmatpush1.msra.mxu0 0.0
    %1160 = vmatprep.subr.mxu0 0.0
    %1161 = vmatpush1.msra.mxu0 0.0
    %1162 = vmatprep.subr.mxu0 0.0
    %1163 = vmatpush1.msra.mxu0 0.0
    %1164 = vmatprep.subr.mxu0 0.0
    %1165 = vmatpush1.msra.mxu0 0.0
    %1166 = vmatprep.subr.mxu0 0.0
    %1167 = vmatpush1.msra.mxu0 0.0
    %1168 = vmatprep.mubr.f32.mxu0 0.0
    %1169 = vmatmul.mubr.f32.gmra.mrb[0].mxu0 %v1102
    %v1170 = vpop.f32.mrb[0].mxu0
    %v1171 = vadd.f32 %v1099, %v1170
    %v1172 = vpop.f32.mrb[0].mxu0
    %1173 = vdwg.mxu0
    %v1174 = vadd.f32 %v1089, %v1171
    %v1175 = vxor.u32 %v1174, 2147483648
    %v1176 = vmul.f32 %v1175, 1.442695
    %v1177 = vpow.pop %v1176
    %v1178 = vadd.f32 %v1177, 1.0
    %v1179 = vrcp.pop %v1178
    %v1180 = vmul.f32 1.0, %v1179
    %1182 = vrot.lane.b32.xlu0 %v1171, 64
    %v1183 = vpop.permute.xlu0 %1182
    %v1185 = vmul.f32 %v1180, %v1183
    %1187 = vrot.lane.b32.xlu0 %v1185, 64
    %v1188 = vpop.permute.xlu0 %1187
    %v1190 = vadd.f32 %v1089, %v1188
    %v1191 = vtanh.pop %v1190
    %v1192 = vsub.f32 1.0, %v1180
    %1194 = vrot.lane.b32.xlu0 %v1191, 96
    %v1195 = vpop.permute.xlu0 %1194
    %v1197 = vmul.f32 %v1192, %v1195
    %1198 = vrot.lane.b32.xlu0 %v929, 32
    %v1199 = vpop.permute.xlu0 %1198
    %v1201 = vmul.f32 %v1180, %v1199
    %v1202 = vadd.f32 %v1197, %v1201
    %1204 = vrot.lane.b32.xlu0 %v1202, 96
    %v1205 = vpop.permute.xlu0 %1204
    %vm1207 = vcmask 254976
    %1208 = vst.msk [vmem:[#allocation25] sm:$0x3] %vm1207, %v1205
    %v1209 = vld [vmem:[%s334] sm:$0x3]
    %v1210 = vld [vmem:[%s20] sm:$0xff]
    %v1211 = vld [vmem:[%s20 + $0x8] sm:$0xff]
    %v1212 = vld [vmem:[%s20 + $0x10] sm:$0xff]
    %v1213 = vld [vmem:[%s20 + $0x18] sm:$0xff]
    %v1214 = vld [vmem:[#allocation21] sm:$0x1]
    %v1216 = vlaneseq
    %v1217 = vshrl.u32 %v1216, 7
    %v1218 = vsub.s32 0, %v1217
    %v1219 = vrot.slane %v1214, %v1218
    %v1221 = vsel %vm347, %v1205, 0
    %1223 = vmatprep.subr.mxu0 0.0
    %1224 = vmatpush1.msra.mxu0 %v1210
    %1225 = vmatprep.subr.mxu0 0.0
    %1226 = vmatpush1.msra.mxu0 %v1211
    %1227 = vmatprep.subr.mxu0 0.0
    %1228 = vmatpush1.msra.mxu0 %v1212
    %1229 = vmatprep.subr.mxu0 0.0
    %1230 = vmatpush1.msra.mxu0 %v1213
    %1231 = vmatprep.subr.mxu0 0.0
    %1232 = vmatpush1.msra.mxu0 0.0
    %1233 = vmatprep.subr.mxu0 0.0
    %1234 = vmatpush1.msra.mxu0 0.0
    %1235 = vmatprep.subr.mxu0 0.0
    %1236 = vmatpush1.msra.mxu0 0.0
    %1237 = vmatprep.subr.mxu0 0.0
    %1238 = vmatpush1.msra.mxu0 0.0
    %1239 = vmatprep.subr.mxu0 0.0
    %1240 = vmatpush1.msra.mxu0 0.0
    %1241 = vmatprep.subr.mxu0 0.0
    %1242 = vmatpush1.msra.mxu0 0.0
    %1243 = vmatprep.subr.mxu0 0.0
    %1244 = vmatpush1.msra.mxu0 0.0
    %1245 = vmatprep.subr.mxu0 0.0
    %1246 = vmatpush1.msra.mxu0 0.0
    %1247 = vmatprep.subr.mxu0 0.0
    %1248 = vmatpush1.msra.mxu0 0.0
    %1249 = vmatprep.subr.mxu0 0.0
    %1250 = vmatpush1.msra.mxu0 0.0
    %1251 = vmatprep.subr.mxu0 0.0
    %1252 = vmatpush1.msra.mxu0 0.0
    %1253 = vmatprep.subr.mxu0 0.0
    %1254 = vmatpush1.msra.mxu0 0.0
    %1255 = vmatprep.subr.mxu0 0.0
    %1256 = vmatpush1.msra.mxu0 0.0
    %1257 = vmatprep.subr.mxu0 0.0
    %1258 = vmatpush1.msra.mxu0 0.0
    %1259 = vmatprep.subr.mxu0 0.0
    %1260 = vmatpush1.msra.mxu0 0.0
    %1261 = vmatprep.subr.mxu0 0.0
    %1262 = vmatpush1.msra.mxu0 0.0
    %1263 = vmatprep.subr.mxu0 0.0
    %1264 = vmatpush1.msra.mxu0 0.0
    %1265 = vmatprep.subr.mxu0 0.0
    %1266 = vmatpush1.msra.mxu0 0.0
    %1267 = vmatprep.subr.mxu0 0.0
    %1268 = vmatpush1.msra.mxu0 0.0
    %1269 = vmatprep.subr.mxu0 0.0
    %1270 = vmatpush1.msra.mxu0 0.0
    %1271 = vmatprep.subr.mxu0 0.0
    %1272 = vmatpush1.msra.mxu0 0.0
    %1273 = vmatprep.subr.mxu0 0.0
    %1274 = vmatpush1.msra.mxu0 0.0
    %1275 = vmatprep.subr.mxu0 0.0
    %1276 = vmatpush1.msra.mxu0 0.0
    %1277 = vmatprep.subr.mxu0 0.0
    %1278 = vmatpush1.msra.mxu0 0.0
    %1279 = vmatprep.subr.mxu0 0.0
    %1280 = vmatpush1.msra.mxu0 0.0
    %1281 = vmatprep.subr.mxu0 0.0
    %1282 = vmatpush1.msra.mxu0 0.0
    %1283 = vmatprep.subr.mxu0 0.0
    %1284 = vmatpush1.msra.mxu0 0.0
    %1285 = vmatprep.subr.mxu0 0.0
    %1286 = vmatpush1.msra.mxu0 0.0
    %1287 = vmatprep.mubr.f32.mxu0 0.0
    %1288 = vmatmul.mubr.f32.gmra.mrb[0].mxu0 %v1221
    %v1289 = vpop.f32.mrb[0].mxu0
    %v1290 = vadd.f32 %v1219, %v1289
    %v1291 = vpop.f32.mrb[0].mxu0
    %1292 = vdwg.mxu0
    %v1293 = vld [vmem:[#allocation20] sm:$0xff]
    %v1294 = vld [vmem:[#allocation20 + $0x8] sm:$0xff]
    %v1295 = vld [vmem:[#allocation20 + $0x10] sm:$0xff]
    %v1296 = vld [vmem:[#allocation20 + $0x18] sm:$0xff]
    %v1297 = vld [vmem:[#allocation23] sm:$0x1]
    %v1299 = vlaneseq
    %v1300 = vshrl.u32 %v1299, 7
    %v1301 = vsub.s32 0, %v1300
    %v1302 = vrot.slane %v1297, %v1301
    %v1305 = vsel %vm347, %v1209, 0
    %1307 = vmatprep.subr.mxu0 0.0
    %1308 = vmatpush1.msra.mxu0 %v1293
    %1309 = vmatprep.subr.mxu0 0.0
    %1310 = vmatpush1.msra.mxu0 %v1294
    %1311 = vmatprep.subr.mxu0 0.0
    %1312 = vmatpush1.msra.mxu0 %v1295
    %1313 = vmatprep.subr.mxu0 0.0
    %1314 = vmatpush1.msra.mxu0 %v1296
    %1315 = vmatprep.subr.mxu0 0.0
    %1316 = vmatpush1.msra.mxu0 0.0
    %1317 = vmatprep.subr.mxu0 0.0
    %1318 = vmatpush1.msra.mxu0 0.0
    %1319 = vmatprep.subr.mxu0 0.0
    %1320 = vmatpush1.msra.mxu0 0.0
    %1321 = vmatprep.subr.mxu0 0.0
    %1322 = vmatpush1.msra.mxu0 0.0
    %1323 = vmatprep.subr.mxu0 0.0
    %1324 = vmatpush1.msra.mxu0 0.0
    %1325 = vmatprep.subr.mxu0 0.0
    %1326 = vmatpush1.msra.mxu0 0.0
    %1327 = vmatprep.subr.mxu0 0.0
    %1328 = vmatpush1.msra.mxu0 0.0
    %1329 = vmatprep.subr.mxu0 0.0
    %1330 = vmatpush1.msra.mxu0 0.0
    %1331 = vmatprep.subr.mxu0 0.0
    %1332 = vmatpush1.msra.mxu0 0.0
    %1333 = vmatprep.subr.mxu0 0.0
    %1334 = vmatpush1.msra.mxu0 0.0
    %1335 = vmatprep.subr.mxu0 0.0
    %1336 = vmatpush1.msra.mxu0 0.0
    %1337 = vmatprep.subr.mxu0 0.0
    %1338 = vmatpush1.msra.mxu0 0.0
    %1339 = vmatprep.subr.mxu0 0.0
    %1340 = vmatpush1.msra.mxu0 0.0
    %1341 = vmatprep.subr.mxu0 0.0
    %1342 = vmatpush1.msra.mxu0 0.0
    %1343 = vmatprep.subr.mxu0 0.0
    %1344 = vmatpush1.msra.mxu0 0.0
    %1345 = vmatprep.subr.mxu0 0.0
    %1346 = vmatpush1.msra.mxu0 0.0
    %1347 = vmatprep.subr.mxu0 0.0
    %1348 = vmatpush1.msra.mxu0 0.0
    %1349 = vmatprep.subr.mxu0 0.0
    %1350 = vmatpush1.msra.mxu0 0.0
    %1351 = vmatprep.subr.mxu0 0.0
    %1352 = vmatpush1.msra.mxu0 0.0
    %1353 = vmatprep.subr.mxu0 0.0
    %1354 = vmatpush1.msra.mxu0 0.0
    %1355 = vmatprep.subr.mxu0 0.0
    %1356 = vmatpush1.msra.mxu0 0.0
    %1357 = vmatprep.subr.mxu0 0.0
    %1358 = vmatpush1.msra.mxu0 0.0
    %1359 = vmatprep.subr.mxu0 0.0
    %1360 = vmatpush1.msra.mxu0 0.0
    %1361 = vmatprep.subr.mxu0 0.0
    %1362 = vmatpush1.msra.mxu0 0.0
    %1363 = vmatprep.subr.mxu0 0.0
    %1364 = vmatpush1.msra.mxu0 0.0
    %1365 = vmatprep.subr.mxu0 0.0
    %1366 = vmatpush1.msra.mxu0 0.0
    %1367 = vmatprep.subr.mxu0 0.0
    %1368 = vmatpush1.msra.mxu0 0.0
    %1369 = vmatprep.subr.mxu0 0.0
    %1370 = vmatpush1.msra.mxu0 0.0
    %1371 = vmatprep.mubr.f32.mxu0 0.0
    %1372 = vmatmul.mubr.f32.gmra.mrb[0].mxu0 %v1305
    %v1373 = vpop.f32.mrb[0].mxu0
    %v1374 = vadd.f32 %v1302, %v1373
    %v1375 = vpop.f32.mrb[0].mxu0
    %1376 = vdwg.mxu0
    %v1377 = vadd.f32 %v1290, %v1374
    %v1378 = vxor.u32 %v1377, 2147483648
    %v1379 = vmul.f32 %v1378, 1.442695
    %v1380 = vpow.pop %v1379
    %v1381 = vadd.f32 %v1380, 1.0
    %v1382 = vrcp.pop %v1381
    %v1383 = vmul.f32 1.0, %v1382
    %1385 = vrot.lane.b32.xlu0 %v1374, 64
    %v1386 = vpop.permute.xlu0 %1385
    %v1388 = vmul.f32 %v1383, %v1386
    %1390 = vrot.lane.b32.xlu0 %v1388, 64
    %v1391 = vpop.permute.xlu0 %1390
    %v1393 = vadd.f32 %v1290, %v1391
    %v1394 = vtanh.pop %v1393
    %v1395 = vsub.f32 1.0, %v1383
    %1397 = vrot.lane.b32.xlu0 %v1394, 96
    %v1398 = vpop.permute.xlu0 %1397
    %v1400 = vmul.f32 %v1395, %v1398
    %1401 = vrot.lane.b32.xlu0 %v1209, 32
    %v1402 = vpop.permute.xlu0 %1401
    %v1404 = vmul.f32 %v1383, %v1402
    %v1405 = vadd.f32 %v1400, %v1404
    %1407 = vrot.lane.b32.xlu0 %v1405, 96
    %v1408 = vpop.permute.xlu0 %1407
    %s1410 = scalar_lea.vmem [#allocation25], 2
    %1411 = vst.msk [vmem:[%s1410] sm:$0x3] %vm1207, %v1408
    %v1412 = vld [vmem:[%s13] sm:$0xff]
    %v1413 = vld [vmem:[%s13 + $0x8] sm:$0xff]
    %v1414 = vld [vmem:[%s13 + $0x10] sm:$0xff]
    %v1415 = vld [vmem:[%s13 + $0x18] sm:$0xff]
    %v1416 = vld [vmem:[#allocation12] sm:$0x1]
    %v1418 = vlaneseq
    %v1419 = vshrl.u32 %v1418, 7
    %v1420 = vsub.s32 0, %v1419
    %v1421 = vrot.slane %v1416, %v1420
    %v1423 = vsel %vm347, %v1408, 0
    %1425 = vmatprep.subr.mxu0 0.0
    %1426 = vmatpush1.msra.mxu0 %v1412
    %1427 = vmatprep.subr.mxu0 0.0
    %1428 = vmatpush1.msra.mxu0 %v1413
    %1429 = vmatprep.subr.mxu0 0.0
    %1430 = vmatpush1.msra.mxu0 %v1414
    %1431 = vmatprep.subr.mxu0 0.0
    %1432 = vmatpush1.msra.mxu0 %v1415
    %1433 = vmatprep.subr.mxu0 0.0
    %1434 = vmatpush1.msra.mxu0 0.0
    %1435 = vmatprep.subr.mxu0 0.0
    %1436 = vmatpush1.msra.mxu0 0.0
    %1437 = vmatprep.subr.mxu0 0.0
    %1438 = vmatpush1.msra.mxu0 0.0
    %1439 = vmatprep.subr.mxu0 0.0
    %1440 = vmatpush1.msra.mxu0 0.0
    %1441 = vmatprep.subr.mxu0 0.0
    %1442 = vmatpush1.msra.mxu0 0.0
    %1443 = vmatprep.subr.mxu0 0.0
    %1444 = vmatpush1.msra.mxu0 0.0
    %1445 = vmatprep.subr.mxu0 0.0
    %1446 = vmatpush1.msra.mxu0 0.0
    %1447 = vmatprep.subr.mxu0 0.0
    %1448 = vmatpush1.msra.mxu0 0.0
    %1449 = vmatprep.subr.mxu0 0.0
    %1450 = vmatpush1.msra.mxu0 0.0
    %1451 = vmatprep.subr.mxu0 0.0
    %1452 = vmatpush1.msra.mxu0 0.0
    %1453 = vmatprep.subr.mxu0 0.0
    %1454 = vmatpush1.msra.mxu0 0.0
    %1455 = vmatprep.subr.mxu0 0.0
    %1456 = vmatpush1.msra.mxu0 0.0
    %1457 = vmatprep.subr.mxu0 0.0
    %1458 = vmatpush1.msra.mxu0 0.0
    %1459 = vmatprep.subr.mxu0 0.0
    %1460 = vmatpush1.msra.mxu0 0.0
    %1461 = vmatprep.subr.mxu0 0.0
    %1462 = vmatpush1.msra.mxu0 0.0
    %1463 = vmatprep.subr.mxu0 0.0
    %1464 = vmatpush1.msra.mxu0 0.0
    %1465 = vmatprep.subr.mxu0 0.0
    %1466 = vmatpush1.msra.mxu0 0.0
    %1467 = vmatprep.subr.mxu0 0.0
    %1468 = vmatpush1.msra.mxu0 0.0
    %1469 = vmatprep.subr.mxu0 0.0
    %1470 = vmatpush1.msra.mxu0 0.0
    %1471 = vmatprep.subr.mxu0 0.0
    %1472 = vmatpush1.msra.mxu0 0.0
    %1473 = vmatprep.subr.mxu0 0.0
    %1474 = vmatpush1.msra.mxu0 0.0
    %1475 = vmatprep.subr.mxu0 0.0
    %1476 = vmatpush1.msra.mxu0 0.0
    %1477 = vmatprep.subr.mxu0 0.0
    %1478 = vmatpush1.msra.mxu0 0.0
    %1479 = vmatprep.subr.mxu0 0.0
    %1480 = vmatpush1.msra.mxu0 0.0
    %1481 = vmatprep.subr.mxu0 0.0
    %1482 = vmatpush1.msra.mxu0 0.0
    %1483 = vmatprep.subr.mxu0 0.0
    %1484 = vmatpush1.msra.mxu0 0.0
    %1485 = vmatprep.subr.mxu0 0.0
    %1486 = vmatpush1.msra.mxu0 0.0
    %1487 = vmatprep.subr.mxu0 0.0
    %1488 = vmatpush1.msra.mxu0 0.0
    %1489 = vmatprep.mubr.f32.mxu0 0.0
    %1490 = vmatmul.mubr.f32.gmra.mrb[0].mxu0 %v1423
    %v1491 = vpop.f32.mrb[0].mxu0
    %v1492 = vadd.f32 %v1421, %v1491
    %v1493 = vpop.f32.mrb[0].mxu0
    %1494 = vdwg.mxu0
    %vm1495 = vcmask 123904
    %v1496 = vsel %vm1495, %v1492, -inf
    %1497 = vmax.xlane.f32.xlu0 %v1496
    %v1498 = vpop.xlane.xlu0 %1497
    %v1499 = vsub.f32 %v1492, %v1498
    %v1500 = vmul.f32 %v1499, 1.442695
    %v1501 = vpow.pop %v1500
    %v1502 = vsel %vm1495, %v1501, 0.0
    %1503 = vadd.xlane.f32.xlu0 %v1502
    %v1504 = vpop.xlane.xlu0 %1503
    %v1505 = vlog2.pop %v1504
    %v1506 = vmul.f32 %v1505, 0.6931472
    %v1507 = vsub.f32 %v1499, %v1506
    %1508 = vst.msk [vmem:[#allocation24] sm:$0x3] %vm1495, %v1507
    // Predicated region
    $region150: #{decoder_forward.1} parent=1 // pred_check
      _
    $region151: #{decoder_forward.1} parent=1 // pred_check_branch
      %1510 = sbr.rel (0) target = $region153
    $region152: #{decoder_forward.1} parent=1 // pred_region
      %s1512 = ssub.s32 32, 32
      %1513 = vsyncadd [#allocation5], %s1512
      %s1515 = sshll.u32 [#allocation24], 4
      %s1516 = int_to_ptr.vmem [resolvable:$true] %s1515
      %1518 = dma.vmem_to_hbm [thread:$0]  %s1516, 32, %s24, [#allocation5]
    $region153: #{decoder_forward.1} parent=1 // pred_fallthru
      _
    // Predicated region
    $region154: #{decoder_forward.1} parent=1 // pred_check
      _
    $region155: #{decoder_forward.1} parent=1 // pred_check_branch
      %1520 = sbr.rel (0) target = $region157
    $region156: #{decoder_forward.1} parent=1 // pred_region
      %s1522 = ssub.s32 64, 64
      %1523 = vsyncadd [#allocation26], %s1522
      %s1524 = sshll.u32 [#allocation25], 4
      %s1525 = int_to_ptr.vmem [resolvable:$true] %s1524
      %1530 = dma.vmem_to_hbm [thread:$0]  %s1525, 64, %s25, [#allocation26], 32, 32, 2
    $region157: #{decoder_forward.1} parent=1 // pred_fallthru
      _
    // Predicated region
    $region158: #{decoder_forward.1} parent=1 // pred_check
      _
    $region159: #{decoder_forward.1} parent=1 // pred_check_branch
      %1532 = sbr.rel (0) target = $region161
    $region160: #{decoder_forward.1} parent=1 // pred_region
      %s1534 = ssub.s32 32, 32
      %1535 = vsyncadd [#allocation26], %s1534
      %s1537 = sshll.u32 [#allocation27], 4
      %s1538 = int_to_ptr.vmem [resolvable:$true] %s1537
      %1540 = dma.vmem_to_hbm [thread:$0]  %s1538, 32, %s26, [#allocation26]
    $region161: #{decoder_forward.1} parent=1 // pred_fallthru
      _
    // Predicated region
    $region162: #{decoder_forward.1} parent=1 // pred_check
      _
    $region163: #{decoder_forward.1} parent=1 // pred_check_branch
      %1542 = sbr.rel (0) target = $region165
    $region164: #{decoder_forward.1} parent=1 // pred_region
      %1543 = dma.done [#allocation5], 32
    $region165: #{decoder_forward.1} parent=1 // pred_fallthru
      _
    // Predicated region
    $region166: #{decoder_forward.1} parent=1 // pred_check
      _
    $region167: #{decoder_forward.1} parent=1 // pred_check_branch
      %1545 = sbr.rel (0) target = $region169
    $region168: #{decoder_forward.1} parent=1 // pred_region
      %1546 = dma.done [#allocation26], 64
    $region169: #{decoder_forward.1} parent=1 // pred_fallthru
      _
    // Predicated region
    $region170: #{decoder_forward.1} parent=1 // pred_check
      _
    $region171: #{decoder_forward.1} parent=1 // pred_check_branch
      %1548 = sbr.rel (0) target = $region173
    $region172: #{decoder_forward.1} parent=1 // pred_region
      %1549 = dma.done [#allocation26], 32
    $region173: #{decoder_forward.1} parent=1 // pred_fallthru
      _
    %1550 = vsyncpa [#allocation4], 1
    %1551 = vsyncpa [#allocation7], 1
    %1552 = vsyncpa [#allocation10], 1
    %1553 = vsyncpa [#allocation13], 1
    %1554 = vsyncpa [#allocation16], 1
    %1555 = vsyncpa [#allocation19], 1
    %1556 = vsyncpa [#allocation22], 1
    %1557 = vsyncpa [#allocation5], 1
    %1558 = vsyncpa [#allocation26], 1

</llo_original>
